<compile_context>
chip_gen: v7x
topology: tpu7x:2x2x1
jax: 0.10.0
libtpu: 0.0.40
codegen_flags: <defaults>
</compile_context>

<pallas_src>
import functools
import math

import jax
import jax.numpy as jnp
from jax import lax
from jax.experimental import pallas as pl
from jax.experimental.pallas import tpu as pltpu


def _make_kernel(K, pad, L, tq, Hp, n_t, P0, PB, W, align):
    """Kernel closed over static sizes.

    Grid is (B, 2, n_t).  For each batch row b:
      phase 0, step t:  xp_t = silu(x_t @ Wp + bp) -> bf16 scratch (halo-padded)
                        t > 0:       conv+silu+G for tile t-1 (halo now ready)
                        t == n_t-1:  conv+silu+G for the last tile
      phase 1, step t:  out_t = xp_t @ G + bp      -> (tq, Hp) output block
    """
    use_hint = align >= 8

    def hint(i):
        return pl.multiple_of(i, align) if use_hint else i

    def conv_silu_g(r0, xp_ref, wp_ref, wc_ref, bc_ref, g_ref):
        # One aligned dynamic load of the halo window, then K *static* tap
        # slices of the loaded value (no misaligned dynamic loads, no concat
        # slab), each feeding an accumulated MXU dot.
        win = xp_ref[pl.ds(hint(r0 + (P0 - W)), tq + 2 * W), :]   # (tq+2W, Hp) bf16
        conv = jnp.dot(win[W - pad:W - pad + tq, :], wc_ref[0],
                       preferred_element_type=jnp.float32)
        for k in range(1, K):
            conv += jnp.dot(win[W - pad + k:W - pad + k + tq, :], wc_ref[k],
                            preferred_element_type=jnp.float32)
        conv += bc_ref[...]
        xc = conv * jax.nn.sigmoid(conv)                          # SiLU in f32
        wp_rows = wp_ref[pl.ds(hint(r0), tq), :]                  # (tq, Hp) bf16
        # G += xc^T @ Wp[r0:r0+tq]  (contraction over the sequence rows).
        g_ref[...] += lax.dot_general(
            xc.astype(jnp.bfloat16), wp_rows,
            dimension_numbers=(((0,), (0,)), ((), ())),
            preferred_element_type=jnp.float32)

    def kernel(x_ref, wp_ref, bp_ref, wc_ref, bc_ref, o_ref, xp_ref, g_ref):
        phase = pl.program_id(1)
        t = pl.program_id(2)

        @pl.when((phase == 0) & (t == 0))
        def _init():
            # Zero the conv halo rows and the G accumulator for this batch row.
            xp_ref[pl.ds(0, P0), :] = jnp.zeros((P0, Hp), xp_ref.dtype)
            xp_ref[pl.ds(P0 + L, PB), :] = jnp.zeros((PB, Hp), xp_ref.dtype)
            g_ref[...] = jnp.zeros_like(g_ref)

        @pl.when(phase == 0)
        def _proj():
            # proj + SiLU for this L tile (bf16 MXU, f32 accumulate).
            xt = jnp.dot(x_ref[...], wp_ref[...],
                         preferred_element_type=jnp.float32) + bp_ref[...]
            xt = xt * jax.nn.sigmoid(xt)
            xp_ref[pl.ds(hint(P0 + t * tq), tq), :] = xt.astype(xp_ref.dtype)

        @pl.when((phase == 0) & (t > 0))
        def _conv_prev():
            # Conv for tile t-1 is lagged by one step so its bottom halo exists.
            conv_silu_g((t - 1) * tq, xp_ref, wp_ref, wc_ref, bc_ref, g_ref)

        @pl.when((phase == 0) & (t == n_t - 1))
        def _conv_last():
            # Last tile's bottom halo is the zero padding.
            conv_silu_g((n_t - 1) * tq, xp_ref, wp_ref, wc_ref, bc_ref, g_ref)

        @pl.when(phase == 1)
        def _emit_out():
            # Keep G at ~f32 accuracy by splitting it into bf16 hi/lo parts
            # (two cheap bf16 MXU passes instead of one lossy bf16 cast).
            g = g_ref[...]
            g_hi = g.astype(jnp.bfloat16)
            g_lo = (g - g_hi.astype(jnp.float32)).astype(jnp.bfloat16)
            xp_t = xp_ref[pl.ds(hint(P0 + t * tq), tq), :]        # (tq, Hp) bf16
            out = jnp.dot(xp_t, g_hi, preferred_element_type=jnp.float32)
            out += jnp.dot(xp_t, g_lo, preferred_element_type=jnp.float32)
            o_ref[...] = (out + bp_ref[...]).astype(o_ref.dtype)

    return kernel


@functools.partial(jax.jit, static_argnames=("kernel_size", "tq", "out_dtype",
                                              "single_buffer_weights"))
def mamba_block_forward(x, wp, bp, wc_t, bc, kernel_size, *, tq=None,
                        out_dtype=jnp.float32, single_buffer_weights=False):
    """x: (B, L, D) with L == D.  wp: (D, H), bp: (1, H),
    wc_t: (K, H_in, H_out) with wc_t[k, c, o] == torch_conv_weight[o, c, k],
    bc: (1, H).  Returns (B, L, H) in `out_dtype`."""
    B, L, D = x.shape
    Dw, H = wp.shape
    K = kernel_size
    pad = K // 2
    assert Dw == D
    assert L == D, "MambaBlock.forward requires seq_len == dim (proj(att))"
    assert K % 2 == 1, "even kernel_size breaks the module's own shapes"

    P0 = PB = W = 16           # halo rows (bf16-tile aligned)
    assert pad <= W

    # Pad hidden dim to a lane-dense multiple of 128 (sliced off at the end).
    Hp = ((H + 127) // 128) * 128
    phc = Hp - H

    # L tiling: largest divisor of L <= 512, preferring bf16-aligned tiles.
    if tq is None:
        divs = [d for d in range(1, min(L, 512) + 1) if L % d == 0]
        tq = L
        for mult in (16, 8):
            ok = [d for d in divs if d % mult == 0]
            if ok:
                tq = max(ok)
                break
    assert L % tq == 0, "tq must divide L"
    assert tq % 8 == 0 or tq == L, "tq must be a multiple of 8 (or equal L)"
    n_t = L // tq
    align = 16 if n_t == 1 else math.gcd(16, tq)

    # bf16 MXU operands; biases stay f32 (added to f32 accumulators).
    # TODO(synk): if weights are reused across calls, hoist these pads/casts
    # out of the per-call path (each call re-reads/re-writes them in HBM).
    x_b = x.astype(jnp.bfloat16)
    wp_p = jnp.pad(wp, ((0, 0), (0, phc))).astype(jnp.bfloat16)            # (D, Hp)
    bp_p = jnp.pad(bp, ((0, 0), (0, phc))).astype(jnp.float32)             # (1, Hp)
    wc_p = jnp.pad(wc_t, ((0, 0), (0, phc), (0, phc))).astype(jnp.bfloat16)  # (K,Hp,Hp)
    bc_p = jnp.pad(bc, ((0, 0), (0, phc))).astype(jnp.float32)             # (1, Hp)

    # Constant-index weight specs.  Optionally single-buffer them (halves
    # resident weight VMEM -- the key lever for v7x's 64 MiB at large Hp).
    wkw = dict(pipeline_mode=pl.Buffered(1)) if single_buffer_weights else {}
    in_specs = [
        # x: per-L-tile in phase 0; parked on the last tile in phase 1 (no DMA).
        pl.BlockSpec((pl.Squeezed(), tq, D),
                     lambda b, p, t: (b, (1 - p) * t + p * (n_t - 1), 0)),
        pl.BlockSpec((D, Hp), lambda b, p, t: (0, 0), **wkw),               # wp
        pl.BlockSpec((1, Hp), lambda b, p, t: (0, 0), **wkw),               # bp
        pl.BlockSpec((K, Hp, Hp), lambda b, p, t: (0, 0, 0), **wkw),        # wc
        pl.BlockSpec((1, Hp), lambda b, p, t: (0, 0), **wkw),               # bc
    ]
    # Output: block index is constant (b, 0) throughout phase 0 (never written
    # there, no writeback), then streams per tile in phase 1.
    out_specs = pl.BlockSpec((pl.Squeezed(), tq, Hp), lambda b, p, t: (b, p * t, 0))

    grid_spec = pltpu.PrefetchScalarGridSpec(
        num_scalar_prefetch=0,
        grid=(B, 2, n_t),
        in_specs=in_specs,
        out_specs=out_specs,
        scratch_shapes=[
            pltpu.VMEM((P0 + L + PB, Hp), jnp.bfloat16),   # halo-padded xp (bf16)
            pltpu.VMEM((Hp, Hp), jnp.float32),             # G accumulator
        ],
    )

    obytes = jnp.dtype(out_dtype).itemsize
    wbuf = 1 if single_buffer_weights else 2
    need = (2 * tq * D * 2                                 # x (double-buffered)
            + wbuf * (D * Hp + K * Hp * Hp) * 2            # weights
            + wbuf * 2 * Hp * 4                            # biases
            + 2 * tq * Hp * obytes                         # output tiles
            + (P0 + L + PB) * Hp * 2                       # xp scratch (bf16)
            + Hp * Hp * 4                                  # G accumulator
            + (tq + 2 * W) * Hp * 2                        # conv window temp
            + 4 * tq * Hp * 4 + 2 * Hp * Hp * 2)           # f32 temps, G hi/lo
    try:
        cap = int(pltpu.get_tpu_info().vmem_capacity_bytes)
    except Exception:  # interpret mode / older runtimes
        cap = 64 * 2 ** 20
    vmem_limit = int(min(max(2 * need, 32 * 2 ** 20), int(0.85 * cap)))

    flops = int(2 * B * L * (D * Hp + (K + 1) * Hp * Hp) + 4 * B * L * Hp * Hp)
    transcendentals = int(2 * B * L * Hp)
    bytes_accessed = int(B * L * D * 2 + (D * Hp + K * Hp * Hp) * 2
                         + 4 * Hp * 4 + B * L * Hp * obytes)

    out_p = pl.pallas_call(
        _make_kernel(K, pad, L, tq, Hp, n_t, P0, PB, W, align),
        out_shape=jax.ShapeDtypeStruct((B, L, Hp), out_dtype),
        grid_spec=grid_spec,
        compiler_params=pltpu.CompilerParams(
            dimension_semantics=("parallel", "arbitrary", "arbitrary"),
            vmem_limit_bytes=vmem_limit),
        cost_estimate=pl.CostEstimate(
            flops=flops, transcendentals=transcendentals,
            bytes_accessed=bytes_accessed),
    )(x_b, wp_p, bp_p, wc_p, bc_p)

    return out_p if phc == 0 else out_p[..., :H]


def mamba_block_reference(x, wp, bp, wc_t, bc, kernel_size):
    """Pure-JAX f32 reference mirroring the PyTorch forward exactly."""
    B, L, D = x.shape
    K = kernel_size
    pad = K // 2
    xp = jax.nn.silu(x @ wp + bp[None])                        # (B, L, H)
    xpad = jnp.pad(xp, ((0, 0), (pad, pad), (0, 0)))
    conv = jnp.broadcast_to(bc[None], xp.shape).astype(jnp.float32)
    for k in range(K):
        conv = conv + jnp.einsum('blc,co->blo', xpad[:, k:k + L, :], wc_t[k])
    xc = jax.nn.silu(conv)                                     # (B, L, H)
    att = jnp.einsum('blh,bmh->blm', xp, xc)                   # (B, L, L)
    return att @ wp + bp[None]


if __name__ == "__main__":
    # Small shapes consistent with the module.  The forward pass requires the
    # sequence length L to equal `dim` (proj is reapplied to the (B, L, L)
    # attention-like matrix), so choose L == dim.
    B = 2
    dim = 32            # == sequence length L
    hidden_dim = 32
    kernel_size = 3     # odd -> Conv1d 'same' length output
    L = dim

    key = jax.random.PRNGKey(0)
    k_x, k_wp, k_bp, k_wc, k_bc = jax.random.split(key, 5)

    x = jax.random.normal(k_x, (B, L, dim), dtype=jnp.float32)
    # nn.Linear(dim, hidden_dim): weight (H, D); we store its transpose (D, H).
    wp = jax.random.normal(k_wp, (dim, hidden_dim), dtype=jnp.float32) * 0.1
    bp = jax.random.normal(k_bp, (1, hidden_dim), dtype=jnp.float32) * 0.1
    # nn.Conv1d(H, H, K): weight (H_out, H_in, K); stored as (K, H_in, H_out).
    wc_t = jax.random.normal(
        k_wc, (kernel_size, hidden_dim, hidden_dim), dtype=jnp.float32) * 0.1
    bc = jax.random.normal(k_bc, (1, hidden_dim), dtype=jnp.float32) * 0.1

    ref = mamba_block_reference(x, wp, bp, wc_t, bc, kernel_size)

    # tq=16 -> two L tiles: exercises the lagged conv, both conv branches, and
    # the tiled phase-1 output path.
    out = mamba_block_forward(x, wp, bp, wc_t, bc, kernel_size, tq=16)
    out = jax.block_until_ready(out)
    assert out.shape == (B, L, hidden_dim), out.shape
    err = float(jnp.max(jnp.abs(out - ref)))
    assert jnp.allclose(out, ref, atol=3e-2, rtol=3e-2), err

    # Default tq heuristic (single L tile) as a second smoke test.
    out2 = jax.block_until_ready(
        mamba_block_forward(x, wp, bp, wc_t, bc, kernel_size))
    err2 = float(jnp.max(jnp.abs(out2 - ref)))
    assert jnp.allclose(out2, ref, atol=3e-2, rtol=3e-2), err2

    print("KERNEL_OK")
</pallas_src>

<mosaic_0001>
module attributes {stable_mosaic.version = 11 : i64} {
  func.func @kernel(%arg0: i32, %arg1: i32, %arg2: i32, %arg3: memref<1x16x32xbf16, #tpu.memory_space<vmem>>, %arg4: memref<32x128xbf16, #tpu.memory_space<vmem>>, %arg5: memref<1x128xf32, #tpu.memory_space<vmem>>, %arg6: memref<3x128x128xbf16, #tpu.memory_space<vmem>>, %arg7: memref<1x128xf32, #tpu.memory_space<vmem>>, %arg8: memref<1x16x128xf32, #tpu.memory_space<vmem>>, %arg9: memref<64x128xbf16, #tpu.memory_space<vmem>>, %arg10: memref<128x128xf32, #tpu.memory_space<vmem>>) attributes {dimension_semantics = [#tpu.dimension_semantics<parallel>, #tpu.dimension_semantics<arbitrary>, #tpu.dimension_semantics<arbitrary>], iteration_bounds = array<i64: 2, 2, 2>, scalar_prefetch = 0 : i64, scratch_operands = 2 : i64, tpu.core_type = #tpu.core_type<tc>, window_params = [{transform_indices = @transform_0, window_bounds = array<i64: 1, 16, 32>}, {pipeline_mode = #tpu.pipeline_mode<synchronous>, transform_indices = @transform_1, window_bounds = array<i64: 32, 128>}, {pipeline_mode = #tpu.pipeline_mode<synchronous>, transform_indices = @transform_2, window_bounds = array<i64: 1, 128>}, {pipeline_mode = #tpu.pipeline_mode<synchronous>, transform_indices = @transform_3, window_bounds = array<i64: 3, 128, 128>}, {pipeline_mode = #tpu.pipeline_mode<synchronous>, transform_indices = @transform_4, window_bounds = array<i64: 1, 128>}, {transform_indices = @transform_5, window_bounds = array<i64: 1, 16, 128>}]} {
    %c0_i32 = arith.constant 0 : i32
    %0 = arith.cmpi eq, %arg1, %c0_i32 : i32
    %c0_i32_0 = arith.constant 0 : i32
    %1 = arith.cmpi eq, %arg2, %c0_i32_0 : i32
    %2 = arith.andi %0, %1 : i1
    %3 = arith.extui %2 : i1 to i32
    %c0_i32_1 = arith.constant 0 : i32
    %4 = arith.cmpi ne, %3, %c0_i32_1 : i32
    scf.if %4 {
      %cst = arith.constant 0.000000e+00 : bf16
      %21 = vector.broadcast %cst : bf16 to vector<16x128xbf16>
      %c0 = arith.constant 0 : index
      %c0_11 = arith.constant 0 : index
      %22 = vector.load %arg9[%c0, %c0_11] : memref<64x128xbf16, #tpu.memory_space<vmem>>, vector<16x128xbf16>
      tpu.vector_store %arg9[%c0, %c0_11], %21 {strides = array<i32>} : memref<64x128xbf16, #tpu.memory_space<vmem>>, vector<16x128xbf16>,
      %cst_12 = arith.constant 0.000000e+00 : bf16
      %23 = vector.broadcast %cst_12 : bf16 to vector<16x128xbf16>
      %c48 = arith.constant 48 : index
      %c0_13 = arith.constant 0 : index
      %24 = vector.load %arg9[%c48, %c0_13] : memref<64x128xbf16, #tpu.memory_space<vmem>>, vector<16x128xbf16>
      tpu.vector_store %arg9[%c48, %c0_13], %23 {strides = array<i32>} : memref<64x128xbf16, #tpu.memory_space<vmem>>, vector<16x128xbf16>,
      %cst_14 = arith.constant 0.000000e+00 : f32
      %25 = vector.broadcast %cst_14 : f32 to vector<128x128xf32>
      %c0_15 = arith.constant 0 : index
      %c0_16 = arith.constant 0 : index
      %26 = vector.load %arg10[%c0_15, %c0_16] : memref<128x128xf32, #tpu.memory_space<vmem>>, vector<128x128xf32>
      tpu.vector_store %arg10[%c0_15, %c0_16], %25 {strides = array<i32>} : memref<128x128xf32, #tpu.memory_space<vmem>>, vector<128x128xf32>,
    } else {
    }
    %c0_i32_2 = arith.constant 0 : i32
    %5 = arith.cmpi eq, %arg1, %c0_i32_2 : i32
    %6 = arith.extui %5 : i1 to i32
    %c0_i32_3 = arith.constant 0 : i32
    %7 = arith.cmpi ne, %6, %c0_i32_3 : i32
    scf.if %7 {
      %c0 = arith.constant 0 : index
      %c0_11 = arith.constant 0 : index
      %c0_12 = arith.constant 0 : index
      %21 = vector.load %arg3[%c0, %c0_11, %c0_12] : memref<1x16x32xbf16, #tpu.memory_space<vmem>>, vector<1x16x32xbf16>
      %22 = vector.shape_cast %21 : vector<1x16x32xbf16> to vector<16x32xbf16>
      %c0_13 = arith.constant 0 : index
      %c0_14 = arith.constant 0 : index
      %23 = vector.load %arg4[%c0_13, %c0_14] : memref<32x128xbf16, #tpu.memory_space<vmem>>, vector<32x128xbf16>
      %cst = arith.constant dense<0.000000e+00> : vector<16x128xf32>
      %24 = tpu.matmul %22, %23, %cst {dimension_numbers = #tpu.dot_dimension_numbers<[1], [0], [0], [1], [0, 0, 1, 1], [], []>} : vector<16x32xbf16>, vector<32x128xbf16>, vector<16x128xf32> -> vector<16x128xf32>
      %c0_15 = arith.constant 0 : index
      %c0_16 = arith.constant 0 : index
      %25 = vector.load %arg5[%c0_15, %c0_16] : memref<1x128xf32, #tpu.memory_space<vmem>>, vector<1x128xf32>
      %26 = vector.broadcast %25 : vector<1x128xf32> to vector<16x128xf32>
      %27 = arith.addf %24, %26 : vector<16x128xf32>
      %28 = arith.negf %27 : vector<16x128xf32>
      %29 = math.exp %28 : vector<16x128xf32>
      %cst_17 = arith.constant 1.000000e+00 : f32
      %30 = vector.broadcast %cst_17 : f32 to vector<16x128xf32>
      %31 = arith.addf %30, %29 : vector<16x128xf32>
      %32 = arith.divf %30, %31 : vector<16x128xf32>
      %33 = arith.mulf %27, %32 : vector<16x128xf32>
      %34 = arith.truncf %33 : vector<16x128xf32> to vector<16x128xbf16>
      %c16_i32 = arith.constant 16 : i32
      %35 = arith.muli %arg2, %c16_i32 : i32
      %c16_i32_18 = arith.constant 16 : i32
      %36 = arith.addi %c16_i32_18, %35 : i32
      %37 = tpu.assume_multiple %36, 16 : i32
      %38 = arith.index_cast %37 : i32 to index
      %c0_19 = arith.constant 0 : index
      %39 = vector.load %arg9[%38, %c0_19] : memref<64x128xbf16, #tpu.memory_space<vmem>>, vector<16x128xbf16>
      tpu.vector_store %arg9[%38, %c0_19], %34 {strides = array<i32>} : memref<64x128xbf16, #tpu.memory_space<vmem>>, vector<16x128xbf16>,
    } else {
    }
    %c0_i32_4 = arith.constant 0 : i32
    %8 = arith.cmpi eq, %arg1, %c0_i32_4 : i32
    %c0_i32_5 = arith.constant 0 : i32
    %9 = arith.cmpi sgt, %arg2, %c0_i32_5 : i32
    %10 = arith.andi %8, %9 : i1
    %11 = arith.extui %10 : i1 to i32
    %c0_i32_6 = arith.constant 0 : i32
    %12 = arith.cmpi ne, %11, %c0_i32_6 : i32
    scf.if %12 {
      %c1_i32_11 = arith.constant 1 : i32
      %21 = arith.subi %arg2, %c1_i32_11 : i32
      %c16_i32 = arith.constant 16 : i32
      %22 = arith.muli %21, %c16_i32 : i32
      %c0_i32_12 = arith.constant 0 : i32
      %23 = arith.addi %22, %c0_i32_12 : i32
      %24 = tpu.assume_multiple %23, 16 : i32
      %25 = arith.index_cast %24 : i32 to index
      %c0 = arith.constant 0 : index
      %26 = vector.load %arg9[%25, %c0] : memref<64x128xbf16, #tpu.memory_space<vmem>>, vector<48x128xbf16>
      %27 = vector.extract_strided_slice %26 {offsets = [15, 0], sizes = [16, 128], strides = [1, 1]} : vector<48x128xbf16> to vector<16x128xbf16>
      %c0_13 = arith.constant 0 : index
      %c0_14 = arith.constant 0 : index
      %c0_15 = arith.constant 0 : index
      %28 = vector.load %arg6[%c0_13, %c0_14, %c0_15] : memref<3x128x128xbf16, #tpu.memory_space<vmem>>, vector<1x128x128xbf16>
      %29 = vector.shape_cast %28 : vector<1x128x128xbf16> to vector<128x128xbf16>
      %cst = arith.constant dense<0.000000e+00> : vector<16x128xf32>
      %30 = tpu.matmul %27, %29, %cst {dimension_numbers = #tpu.dot_dimension_numbers<[1], [0], [0], [1], [0, 0, 1, 1], [], []>} : vector<16x128xbf16>, vector<128x128xbf16>, vector<16x128xf32> -> vector<16x128xf32>
      %31 = vector.extract_strided_slice %26 {offsets = [16, 0], sizes = [16, 128], strides = [1, 1]} : vector<48x128xbf16> to vector<16x128xbf16>
      %c1 = arith.constant 1 : index
      %c0_16 = arith.constant 0 : index
      %c0_17 = arith.constant 0 : index
      %32 = vector.load %arg6[%c1, %c0_16, %c0_17] : memref<3x128x128xbf16, #tpu.memory_space<vmem>>, vector<1x128x128xbf16>
      %33 = vector.shape_cast %32 : vector<1x128x128xbf16> to vector<128x128xbf16>
      %cst_18 = arith.constant dense<0.000000e+00> : vector<16x128xf32>
      %34 = tpu.matmul %31, %33, %cst_18 {dimension_numbers = #tpu.dot_dimension_numbers<[1], [0], [0], [1], [0, 0, 1, 1], [], []>} : vector<16x128xbf16>, vector<128x128xbf16>, vector<16x128xf32> -> vector<16x128xf32>
      %35 = arith.addf %30, %34 : vector<16x128xf32>
      %36 = vector.extract_strided_slice %26 {offsets = [17, 0], sizes = [16, 128], strides = [1, 1]} : vector<48x128xbf16> to vector<16x128xbf16>
      %c2 = arith.constant 2 : index
      %c0_19 = arith.constant 0 : index
      %c0_20 = arith.constant 0 : index
      %37 = vector.load %arg6[%c2, %c0_19, %c0_20] : memref<3x128x128xbf16, #tpu.memory_space<vmem>>, vector<1x128x128xbf16>
      %38 = vector.shape_cast %37 : vector<1x128x128xbf16> to vector<128x128xbf16>
      %cst_21 = arith.constant dense<0.000000e+00> : vector<16x128xf32>
      %39 = tpu.matmul %36, %38, %cst_21 {dimension_numbers = #tpu.dot_dimension_numbers<[1], [0], [0], [1], [0, 0, 1, 1], [], []>} : vector<16x128xbf16>, vector<128x128xbf16>, vector<16x128xf32> -> vector<16x128xf32>
      %40 = arith.addf %35, %39 : vector<16x128xf32>
      %c0_22 = arith.constant 0 : index
      %c0_23 = arith.constant 0 : index
      %41 = vector.load %arg7[%c0_22, %c0_23] : memref<1x128xf32, #tpu.memory_space<vmem>>, vector<1x128xf32>
      %42 = vector.broadcast %41 : vector<1x128xf32> to vector<16x128xf32>
      %43 = arith.addf %40, %42 : vector<16x128xf32>
      %44 = arith.negf %43 : vector<16x128xf32>
      %45 = math.exp %44 : vector<16x128xf32>
      %cst_24 = arith.constant 1.000000e+00 : f32
      %46 = vector.broadcast %cst_24 : f32 to vector<16x128xf32>
      %47 = arith.addf %46, %45 : vector<16x128xf32>
      %48 = arith.divf %46, %47 : vector<16x128xf32>
      %49 = arith.mulf %43, %48 : vector<16x128xf32>
      %50 = tpu.assume_multiple %22, 16 : i32
      %51 = arith.index_cast %50 : i32 to index
      %c0_25 = arith.constant 0 : index
      %52 = vector.load %arg4[%51, %c0_25] : memref<32x128xbf16, #tpu.memory_space<vmem>>, vector<16x128xbf16>
      %c0_26 = arith.constant 0 : index
      %c0_27 = arith.constant 0 : index
      %53 = vector.load %arg10[%c0_26, %c0_27] : memref<128x128xf32, #tpu.memory_space<vmem>>, vector<128x128xf32>
      %54 = arith.truncf %49 : vector<16x128xf32> to vector<16x128xbf16>
      %cst_28 = arith.constant dense<0.000000e+00> : vector<128x128xf32>
      %55 = tpu.matmul %54, %52, %cst_28 {dimension_numbers = #tpu.dot_dimension_numbers<[0], [0], [1], [1], [0, 1, 1, 1], [], []>} : vector<16x128xbf16>, vector<16x128xbf16>, vector<128x128xf32> -> vector<128x128xf32>
      %56 = arith.addf %53, %55 : vector<128x128xf32>
      %c0_29 = arith.constant 0 : index
      %c0_30 = arith.constant 0 : index
      %57 = vector.load %arg10[%c0_29, %c0_30] : memref<128x128xf32, #tpu.memory_space<vmem>>, vector<128x128xf32>
      tpu.vector_store %arg10[%c0_29, %c0_30], %56 {strides = array<i32>} : memref<128x128xf32, #tpu.memory_space<vmem>>, vector<128x128xf32>,
    } else {
    }
    %c0_i32_7 = arith.constant 0 : i32
    %13 = arith.cmpi eq, %arg1, %c0_i32_7 : i32
    %c1_i32 = arith.constant 1 : i32
    %14 = arith.cmpi eq, %arg2, %c1_i32 : i32
    %15 = arith.andi %13, %14 : i1
    %16 = arith.extui %15 : i1 to i32
    %c0_i32_8 = arith.constant 0 : i32
    %17 = arith.cmpi ne, %16, %c0_i32_8 : i32
    scf.if %17 {
      %c16_i32 = arith.constant 16 : i32
      %21 = tpu.assume_multiple %c16_i32, 16 : i32
      %22 = arith.index_cast %21 : i32 to index
      %c0 = arith.constant 0 : index
      %23 = vector.load %arg9[%22, %c0] : memref<64x128xbf16, #tpu.memory_space<vmem>>, vector<48x128xbf16>
      %24 = vector.extract_strided_slice %23 {offsets = [15, 0], sizes = [16, 128], strides = [1, 1]} : vector<48x128xbf16> to vector<16x128xbf16>
      %c0_11 = arith.constant 0 : index
      %c0_12 = arith.constant 0 : index
      %c0_13 = arith.constant 0 : index
      %25 = vector.load %arg6[%c0_11, %c0_12, %c0_13] : memref<3x128x128xbf16, #tpu.memory_space<vmem>>, vector<1x128x128xbf16>
      %26 = vector.shape_cast %25 : vector<1x128x128xbf16> to vector<128x128xbf16>
      %cst = arith.constant dense<0.000000e+00> : vector<16x128xf32>
      %27 = tpu.matmul %24, %26, %cst {dimension_numbers = #tpu.dot_dimension_numbers<[1], [0], [0], [1], [0, 0, 1, 1], [], []>} : vector<16x128xbf16>, vector<128x128xbf16>, vector<16x128xf32> -> vector<16x128xf32>
      %28 = vector.extract_strided_slice %23 {offsets = [16, 0], sizes = [16, 128], strides = [1, 1]} : vector<48x128xbf16> to vector<16x128xbf16>
      %c1 = arith.constant 1 : index
      %c0_14 = arith.constant 0 : index
      %c0_15 = arith.constant 0 : index
      %29 = vector.load %arg6[%c1, %c0_14, %c0_15] : memref<3x128x128xbf16, #tpu.memory_space<vmem>>, vector<1x128x128xbf16>
      %30 = vector.shape_cast %29 : vector<1x128x128xbf16> to vector<128x128xbf16>
      %cst_16 = arith.constant dense<0.000000e+00> : vector<16x128xf32>
      %31 = tpu.matmul %28, %30, %cst_16 {dimension_numbers = #tpu.dot_dimension_numbers<[1], [0], [0], [1], [0, 0, 1, 1], [], []>} : vector<16x128xbf16>, vector<128x128xbf16>, vector<16x128xf32> -> vector<16x128xf32>
      %32 = arith.addf %27, %31 : vector<16x128xf32>
      %33 = vector.extract_strided_slice %23 {offsets = [17, 0], sizes = [16, 128], strides = [1, 1]} : vector<48x128xbf16> to vector<16x128xbf16>
      %c2 = arith.constant 2 : index
      %c0_17 = arith.constant 0 : index
      %c0_18 = arith.constant 0 : index
      %34 = vector.load %arg6[%c2, %c0_17, %c0_18] : memref<3x128x128xbf16, #tpu.memory_space<vmem>>, vector<1x128x128xbf16>
      %35 = vector.shape_cast %34 : vector<1x128x128xbf16> to vector<128x128xbf16>
      %cst_19 = arith.constant dense<0.000000e+00> : vector<16x128xf32>
      %36 = tpu.matmul %33, %35, %cst_19 {dimension_numbers = #tpu.dot_dimension_numbers<[1], [0], [0], [1], [0, 0, 1, 1], [], []>} : vector<16x128xbf16>, vector<128x128xbf16>, vector<16x128xf32> -> vector<16x128xf32>
      %37 = arith.addf %32, %36 : vector<16x128xf32>
      %c0_20 = arith.constant 0 : index
      %c0_21 = arith.constant 0 : index
      %38 = vector.load %arg7[%c0_20, %c0_21] : memref<1x128xf32, #tpu.memory_space<vmem>>, vector<1x128xf32>
      %39 = vector.broadcast %38 : vector<1x128xf32> to vector<16x128xf32>
      %40 = arith.addf %37, %39 : vector<16x128xf32>
      %41 = arith.negf %40 : vector<16x128xf32>
      %42 = math.exp %41 : vector<16x128xf32>
      %cst_22 = arith.constant 1.000000e+00 : f32
      %43 = vector.broadcast %cst_22 : f32 to vector<16x128xf32>
      %44 = arith.addf %43, %42 : vector<16x128xf32>
      %45 = arith.divf %43, %44 : vector<16x128xf32>
      %46 = arith.mulf %40, %45 : vector<16x128xf32>
      %c16_i32_23 = arith.constant 16 : i32
      %47 = tpu.assume_multiple %c16_i32_23, 16 : i32
      %48 = arith.index_cast %47 : i32 to index
      %c0_24 = arith.constant 0 : index
      %49 = vector.load %arg4[%48, %c0_24] : memref<32x128xbf16, #tpu.memory_space<vmem>>, vector<16x128xbf16>
      %c0_25 = arith.constant 0 : index
      %c0_26 = arith.constant 0 : index
      %50 = vector.load %arg10[%c0_25, %c0_26] : memref<128x128xf32, #tpu.memory_space<vmem>>, vector<128x128xf32>
      %51 = arith.truncf %46 : vector<16x128xf32> to vector<16x128xbf16>
      %cst_27 = arith.constant dense<0.000000e+00> : vector<128x128xf32>
      %52 = tpu.matmul %51, %49, %cst_27 {dimension_numbers = #tpu.dot_dimension_numbers<[0], [0], [1], [1], [0, 1, 1, 1], [], []>} : vector<16x128xbf16>, vector<16x128xbf16>, vector<128x128xf32> -> vector<128x128xf32>
      %53 = arith.addf %50, %52 : vector<128x128xf32>
      %c0_28 = arith.constant 0 : index
      %c0_29 = arith.constant 0 : index
      %54 = vector.load %arg10[%c0_28, %c0_29] : memref<128x128xf32, #tpu.memory_space<vmem>>, vector<128x128xf32>
      tpu.vector_store %arg10[%c0_28, %c0_29], %53 {strides = array<i32>} : memref<128x128xf32, #tpu.memory_space<vmem>>, vector<128x128xf32>,
    } else {
    }
    %c1_i32_9 = arith.constant 1 : i32
    %18 = arith.cmpi eq, %arg1, %c1_i32_9 : i32
    %19 = arith.extui %18 : i1 to i32
    %c0_i32_10 = arith.constant 0 : i32
    %20 = arith.cmpi ne, %19, %c0_i32_10 : i32
    scf.if %20 {
      %c0 = arith.constant 0 : index
      %c0_11 = arith.constant 0 : index
      %21 = vector.load %arg10[%c0, %c0_11] : memref<128x128xf32, #tpu.memory_space<vmem>>, vector<128x128xf32>
      %22 = arith.truncf %21 : vector<128x128xf32> to vector<128x128xbf16>
      %23 = arith.extf %22 : vector<128x128xbf16> to vector<128x128xf32>
      %24 = arith.subf %21, %23 : vector<128x128xf32>
      %25 = arith.truncf %24 : vector<128x128xf32> to vector<128x128xbf16>
      %c16_i32 = arith.constant 16 : i32
      %26 = arith.muli %arg2, %c16_i32 : i32
      %c16_i32_12 = arith.constant 16 : i32
      %27 = arith.addi %c16_i32_12, %26 : i32
      %28 = tpu.assume_multiple %27, 16 : i32
      %29 = arith.index_cast %28 : i32 to index
      %c0_13 = arith.constant 0 : index
      %30 = vector.load %arg9[%29, %c0_13] : memref<64x128xbf16, #tpu.memory_space<vmem>>, vector<16x128xbf16>
      %cst = arith.constant dense<0.000000e+00> : vector<16x128xf32>
      %31 = tpu.matmul %30, %22, %cst {dimension_numbers = #tpu.dot_dimension_numbers<[1], [0], [0], [1], [0, 0, 1, 1], [], []>} : vector<16x128xbf16>, vector<128x128xbf16>, vector<16x128xf32> -> vector<16x128xf32>
      %cst_14 = arith.constant dense<0.000000e+00> : vector<16x128xf32>
      %32 = tpu.matmul %30, %25, %cst_14 {dimension_numbers = #tpu.dot_dimension_numbers<[1], [0], [0], [1], [0, 0, 1, 1], [], []>} : vector<16x128xbf16>, vector<128x128xbf16>, vector<16x128xf32> -> vector<16x128xf32>
      %33 = arith.addf %31, %32 : vector<16x128xf32>
      %c0_15 = arith.constant 0 : index
      %c0_16 = arith.constant 0 : index
      %34 = vector.load %arg5[%c0_15, %c0_16] : memref<1x128xf32, #tpu.memory_space<vmem>>, vector<1x128xf32>
      %35 = vector.broadcast %34 : vector<1x128xf32> to vector<16x128xf32>
      %36 = arith.addf %33, %35 : vector<16x128xf32>
      %c0_17 = arith.constant 0 : index
      %c0_18 = arith.constant 0 : index
      %c0_19 = arith.constant 0 : index
      %37 = vector.load %arg8[%c0_17, %c0_18, %c0_19] : memref<1x16x128xf32, #tpu.memory_space<vmem>>, vector<1x16x128xf32>
      %38 = vector.shape_cast %37 : vector<1x16x128xf32> to vector<16x128xf32>
      %39 = vector.shape_cast %36 : vector<16x128xf32> to vector<1x16x128xf32>
      tpu.vector_store %arg8[%c0_17, %c0_18, %c0_19], %39 {strides = array<i32>} : memref<1x16x128xf32, #tpu.memory_space<vmem>>, vector<1x16x128xf32>,
    } else {
    }
    return
  }
  func.func @transform_0(%arg0: i32, %arg1: i32, %arg2: i32) -> (i32, i32, i32) {
    %c1_i32 = arith.constant 1 : i32
    %0 = arith.subi %c1_i32, %arg1 : i32
    %1 = arith.muli %0, %arg2 : i32
    %c1_i32_0 = arith.constant 1 : i32
    %2 = arith.muli %arg1, %c1_i32_0 : i32
    %3 = arith.addi %1, %2 : i32
    %c0_i32 = arith.constant 0 : i32
    %c0_i32_1 = arith.constant 0 : i32
    return %arg0, %3, %c0_i32 : i32, i32, i32
  }
  func.func @transform_1(%arg0: i32, %arg1: i32, %arg2: i32) -> (i32, i32) {
    %c0_i32 = arith.constant 0 : i32
    %c0_i32_0 = arith.constant 0 : i32
    %c0_i32_1 = arith.constant 0 : i32
    return %c0_i32, %c0_i32_0 : i32, i32
  }
  func.func @transform_2(%arg0: i32, %arg1: i32, %arg2: i32) -> (i32, i32) {
    %c0_i32 = arith.constant 0 : i32
    %c0_i32_0 = arith.constant 0 : i32
    %c0_i32_1 = arith.constant 0 : i32
    return %c0_i32, %c0_i32_0 : i32, i32
  }
  func.func @transform_3(%arg0: i32, %arg1: i32, %arg2: i32) -> (i32, i32, i32) {
    %c0_i32 = arith.constant 0 : i32
    %c0_i32_0 = arith.constant 0 : i32
    %c0_i32_1 = arith.constant 0 : i32
    %c0_i32_2 = arith.constant 0 : i32
    return %c0_i32, %c0_i32_0, %c0_i32_1 : i32, i32, i32
  }
  func.func @transform_4(%arg0: i32, %arg1: i32, %arg2: i32) -> (i32, i32) {
    %c0_i32 = arith.constant 0 : i32
    %c0_i32_0 = arith.constant 0 : i32
    %c0_i32_1 = arith.constant 0 : i32
    return %c0_i32, %c0_i32_0 : i32, i32
  }
  func.func @transform_5(%arg0: i32, %arg1: i32, %arg2: i32) -> (i32, i32, i32) {
    %0 = arith.muli %arg1, %arg2 : i32
    %c0_i32 = arith.constant 0 : i32
    %c0_i32_0 = arith.constant 0 : i32
    return %arg0, %0, %c0_i32 : i32, i32, i32
  }
}

</mosaic_0001>

<llo_original>
// kernel: mamba_block_forward.1
$region0: #{mamba_block_forward.1}
  #allocation0 [shape = 'u32[]', space=smem, size = 0x4, offset = 0x4, fixed_abs, tag = 'smem constant byte address 0x4 - core index']
  #allocation1 [shape = 'u32[144,128]{1,0:T(1,128)}', space=vmem, size = 0x12000, scoped, tag = 'internal scratch']
  #allocation2 [shape = 'bf16[64,128]{1,0:T(16,128)(2,1)}', space=vmem, size = 0x4000, scoped, tag = 'scratch operand']
  #allocation3 [shape = 'f32[128,128]{1,0:T(8,128)}', space=vmem, size = 0x10000, scoped, tag = 'scratch operand']
  %s0 = inlined_call_operand.vmem [shape: bf16[2,32,32], index: 0, kind: input, shape index: {}]
  %s1 = inlined_call_operand.vmem [shape: bf16[32,128], index: 1, kind: input, shape index: {}]
  %s2 = inlined_call_operand.vmem [shape: f32[1,128], index: 2, kind: input, shape index: {}]
  %s3 = inlined_call_operand.vmem [shape: bf16[3,128,128], index: 3, kind: input, shape index: {}]
  %s4 = inlined_call_operand.vmem [shape: f32[1,128], index: 4, kind: input, shape index: {}]
  %s5 = inlined_call_operand.hbm [shape: f32[2,32,128], index: 5, kind: output, shape index: {}]
  %s6 = sld [smem:[#allocation0]]
  $region73: #{mamba_block_forward.1} parent=0
    _
  %s8 = ssub.s32 1, %s6
  %s9 = scalar_select 0, %s8, %s6
  $region1: #{mamba_block_forward.1} parent=0
    #allocation4 [shape = 'u8[16384]{0}', space=vmem, size = 0x4000, scoped, tag = 'output window, operand 0']
    #allocation5 [shape = 's32[2]{0}', space=sflag, size = 0x8, scoped, tag = 'scoped memory for mamba_block_forward.1']
    %10 = vsyncpa [#allocation5], 0
    %s11 = scalar_lea.sflag [#allocation5], 1
    %12 = vsyncpa %s11, 0
    loop: start=0, step=1, limit=10
    $region2: #{mamba_block_forward.1} parent=1 // loop_pre_header
      _
    $region3: #{mamba_block_forward.1} parent=1 // loop_header
      %s14 = sphi 0, %s18
      %p15 = scmp.ge.s32.totalorder %s14, 10
      %s21 = sphi 0, %s40
      %s22 = sphi 0, %s36
      %s23 = sphi 0, %s32
      %s24 = sphi 0, %s21
      %s25 = sphi 0, %s22
      %s26 = sphi 0, %s23
      %s27 = sphi 0, %s24
      %s28 = sphi 0, %s25
      %s29 = sphi 0, %s26
      %s51 = sphi 0, %s53
      %s54 = sphi 0, %s51
      %s55 = sphi 0, %s54
      %s71 = sphi 0, %s55
      %s75 = sphi 0, %s75
      %s77 = sphi 0, %s75
      %s78 = sphi 0, %s77
      %s92 = sphi 0, %s78
      %s96 = sphi 0, %s96
      %s98 = sphi 0, %s96
      %s99 = sphi 0, %s98
      %s113 = sphi 0, %s99
      %s117 = sphi 0, %s117
      %s119 = sphi 0, %s117
      %s120 = sphi 0, %s119
      %s134 = sphi 0, %s120
      %s138 = sphi 0, %s138
      %s140 = sphi 0, %s138
      %s141 = sphi 0, %s140
      %s155 = sphi 0, %s141
      %s165 = sphi 0, %s167
      %s168 = sphi 0, %s165
      %s169 = sphi 0, %s168
      %s185 = sphi 0, %s169
    $region4: #{mamba_block_forward.1} parent=1 // loop_header_branch
      %17 = sbr.rel (%p15) target = $region8
    $region5: #{mamba_block_forward.1} parent=1 // loop_body
      %s19 = ssub.s32 %s14, 1
      %s20 = ssub.s32 %s14, 2
      %s30 = sadd.s32 1, %s23
      %p31 = scmp.ge.s32.totalorder %s30, 2
      %s32 = scalar_select %p31, 0, %s30
      %s33 = sadd.s32 1, %s22
      %s34 = scalar_select %p31, %s33, %s22
      %p35 = scmp.ge.s32.totalorder %s34, 2
      %s36 = scalar_select %p35, 0, %s34
      %s37 = sadd.s32 1, %s21
      %s38 = scalar_select %p35, %s37, %s21
      %p39 = scmp.ge.s32.totalorder %s38, 2
      %s40 = scalar_select %p39, 0, %s38
      %s41 = ssub.s32 1, %s22
      %s42 = smul.u32 %s41, %s23
      %s43 = sadd.s32 %s42, %s22
      %s44 = ssub.s32 1, %s36
      %s45 = smul.u32 %s44, %s32
      %s46 = sadd.s32 %s45, %s36
      %s47 = ssub.s32 %s21, %s40
      %s48 = ssub.s32 %s43, %s46
      %s49 = sor.u32 %s47, %s48
      %p50 = scmp.eq.s32.totalorder %s49, 0
      %s52 = sadd.s32 %s51, 1
      %s53 = scalar_select %p50, %s51, %s52
      %p56 = pneg %p50
      %p57 = scmp.eq.s32.totalorder %s14, 7
      %p58 = por %p56, %p57
      %p59 = scmp.ne.s32.totalorder %s51, %s54
      %p60 = scmp.eq.s32.totalorder %s14, 0
      %p61 = por %p59, %p60
      %p62 = scmp.ne.s32.totalorder %s51, %s54
      %p63 = scmp.eq.s32.totalorder %s19, 7
      %p64 = por %p62, %p63
      %p65 = scmp.ne.s32.totalorder %s54, %s55
      %p66 = scmp.eq.s32.totalorder %s19, 0
      %p67 = por %p65, %p66
      %p68 = scmp.ne.s32.totalorder %s54, %s55
      %p69 = scmp.eq.s32.totalorder %s20, 7
      %p70 = por %p68, %p69
      %p72 = scmp.ne.s32.totalorder %s55, %s71
      %p73 = scmp.eq.s32.totalorder %s20, 0
      %p74 = por %p72, %p73
      %s76 = sadd.s32 %s75, 1
      %p79 = scmp.eq.s32.totalorder %s14, 7
      %p80 = scmp.ne.s32.totalorder %s75, %s77
      %p81 = scmp.eq.s32.totalorder %s14, 0
      %p82 = por %p80, %p81
      %p83 = scmp.ne.s32.totalorder %s75, %s77
      %p84 = scmp.eq.s32.totalorder %s19, 7
      %p85 = por %p83, %p84
      %p86 = scmp.ne.s32.totalorder %s77, %s78
      %p87 = scmp.eq.s32.totalorder %s19, 0
      %p88 = por %p86, %p87
      %p89 = scmp.ne.s32.totalorder %s77, %s78
      %p90 = scmp.eq.s32.totalorder %s20, 7
      %p91 = por %p89, %p90
      %p93 = scmp.ne.s32.totalorder %s78, %s92
      %p94 = scmp.eq.s32.totalorder %s20, 0
      %p95 = por %p93, %p94
      %s97 = sadd.s32 %s96, 1
      %p100 = scmp.eq.s32.totalorder %s14, 7
      %p101 = scmp.ne.s32.totalorder %s96, %s98
      %p102 = scmp.eq.s32.totalorder %s14, 0
      %p103 = por %p101, %p102
      %p104 = scmp.ne.s32.totalorder %s96, %s98
      %p105 = scmp.eq.s32.totalorder %s19, 7
      %p106 = por %p104, %p105
      %p107 = scmp.ne.s32.totalorder %s98, %s99
      %p108 = scmp.eq.s32.totalorder %s19, 0
      %p109 = por %p107, %p108
      %p110 = scmp.ne.s32.totalorder %s98, %s99
      %p111 = scmp.eq.s32.totalorder %s20, 7
      %p112 = por %p110, %p111
      %p114 = scmp.ne.s32.totalorder %s99, %s113
      %p115 = scmp.eq.s32.totalorder %s20, 0
      %p116 = por %p114, %p115
      %s118 = sadd.s32 %s117, 1
      %p121 = scmp.eq.s32.totalorder %s14, 7
      %p122 = scmp.ne.s32.totalorder %s117, %s119
      %p123 = scmp.eq.s32.totalorder %s14, 0
      %p124 = por %p122, %p123
      %p125 = scmp.ne.s32.totalorder %s117, %s119
      %p126 = scmp.eq.s32.totalorder %s19, 7
      %p127 = por %p125, %p126
      %p128 = scmp.ne.s32.totalorder %s119, %s120
      %p129 = scmp.eq.s32.totalorder %s19, 0
      %p130 = por %p128, %p129
      %p131 = scmp.ne.s32.totalorder %s119, %s120
      %p132 = scmp.eq.s32.totalorder %s20, 7
      %p133 = por %p131, %p132
      %p135 = scmp.ne.s32.totalorder %s120, %s134
      %p136 = scmp.eq.s32.totalorder %s20, 0
      %p137 = por %p135, %p136
      %s139 = sadd.s32 %s138, 1
      %p142 = scmp.eq.s32.totalorder %s14, 7
      %p143 = scmp.ne.s32.totalorder %s138, %s140
      %p144 = scmp.eq.s32.totalorder %s14, 0
      %p145 = por %p143, %p144
      %p146 = scmp.ne.s32.totalorder %s138, %s140
      %p147 = scmp.eq.s32.totalorder %s19, 7
      %p148 = por %p146, %p147
      %p149 = scmp.ne.s32.totalorder %s140, %s141
      %p150 = scmp.eq.s32.totalorder %s19, 0
      %p151 = por %p149, %p150
      %p152 = scmp.ne.s32.totalorder %s140, %s141
      %p153 = scmp.eq.s32.totalorder %s20, 7
      %p154 = por %p152, %p153
      %p156 = scmp.ne.s32.totalorder %s141, %s155
      %p157 = scmp.eq.s32.totalorder %s20, 0
      %p158 = por %p156, %p157
      %s159 = smul.u32 %s22, %s23
      %s160 = smul.u32 %s36, %s32
      %s161 = ssub.s32 %s21, %s40
      %s162 = ssub.s32 %s159, %s160
      %s163 = sor.u32 %s161, %s162
      %p164 = scmp.eq.s32.totalorder %s163, 0
      %s166 = sadd.s32 %s165, 1
      %s167 = scalar_select %p164, %s165, %s166
      %p170 = pneg %p164
      %p171 = scmp.eq.s32.totalorder %s14, 7
      %p172 = por %p170, %p171
      %p173 = scmp.ne.s32.totalorder %s165, %s168
      %p174 = scmp.eq.s32.totalorder %s14, 0
      %p175 = por %p173, %p174
      %p176 = scmp.ne.s32.totalorder %s165, %s168
      %p177 = scmp.eq.s32.totalorder %s19, 7
      %p178 = por %p176, %p177
      %p179 = scmp.ne.s32.totalorder %s168, %s169
      %p180 = scmp.eq.s32.totalorder %s19, 0
      %p181 = por %p179, %p180
      %p182 = scmp.ne.s32.totalorder %s168, %s169
      %p183 = scmp.eq.s32.totalorder %s20, 7
      %p184 = por %p182, %p183
      %p186 = scmp.ne.s32.totalorder %s169, %s185
      %p187 = scmp.eq.s32.totalorder %s20, 0
      %p188 = por %p186, %p187
      %p189 = scmp.le.s32.totalorder 1, %s14
      %p190 = scmp.lt.s32.totalorder %s14, 9
      %p191 = pnand %p189, %p190
      %p192 = pneg %p191
      // Predicated region
      $region9: #{mamba_block_forward.1} parent=5 // pred_check
        _
      $region10: #{mamba_block_forward.1} parent=5 // pred_check_branch
        %194 = sbr.rel (%p191) target = $region12
      $region11: #{mamba_block_forward.1} parent=5 // pred_region
        %s195 = ssub.s32 %s14, 1
        // Predicated region
        $region13: #{mamba_block_forward.1} parent=11 // pred_check
          %p196 = pneg %p88
        $region14: #{mamba_block_forward.1} parent=11 // pred_check_branch
          %198 = sbr.rel (%p196) target = $region16
        $region15: #{mamba_block_forward.1} parent=11 // pred_region
          _
        $region16: #{mamba_block_forward.1} parent=11 // pred_fallthru
          _
        // Predicated region
        $region17: #{mamba_block_forward.1} parent=11 // pred_check
          %p199 = pneg %p109
        $region18: #{mamba_block_forward.1} parent=11 // pred_check_branch
          %201 = sbr.rel (%p199) target = $region20
        $region19: #{mamba_block_forward.1} parent=11 // pred_region
          _
        $region20: #{mamba_block_forward.1} parent=11 // pred_fallthru
          _
        // Predicated region
        $region21: #{mamba_block_forward.1} parent=11 // pred_check
          %p202 = pneg %p130
        $region22: #{mamba_block_forward.1} parent=11 // pred_check_branch
          %204 = sbr.rel (%p202) target = $region24
        $region23: #{mamba_block_forward.1} parent=11 // pred_region
          _
        $region24: #{mamba_block_forward.1} parent=11 // pred_fallthru
          _
        // Predicated region
        $region25: #{mamba_block_forward.1} parent=11 // pred_check
          %p205 = pneg %p151
        $region26: #{mamba_block_forward.1} parent=11 // pred_check_branch
          %207 = sbr.rel (%p205) target = $region28
        $region27: #{mamba_block_forward.1} parent=11 // pred_region
          _
        $region28: #{mamba_block_forward.1} parent=11 // pred_fallthru
          _
      $region12: #{mamba_block_forward.1} parent=5 // pred_fallthru
        _
      %p208 = scmp.lt.s32.totalorder %s14, 8
      // Predicated region
      $region29: #{mamba_block_forward.1} parent=5 // pred_check
        %p209 = pneg %p208
      $region30: #{mamba_block_forward.1} parent=5 // pred_check_branch
        %211 = sbr.rel (%p209) target = $region32
      $region31: #{mamba_block_forward.1} parent=5 // pred_region
        // Predicated region
        $region33: #{mamba_block_forward.1} parent=31 // pred_check
          %p212 = pneg %p61
        $region34: #{mamba_block_forward.1} parent=31 // pred_check_branch
          %214 = sbr.rel (%p212) target = $region36
        $region35: #{mamba_block_forward.1} parent=31 // pred_region
          %s215 = ssub.s32 1, %s22
          %s216 = smul.u32 %s215, %s23
          %s217 = sadd.s32 %s216, %s22
          %s218 = smul.u32 2, %s217
          %p219 = scmp.lt.s32.totalorder %s21, 1
          %s220 = scalar_select %p219, %s21, 1
          %p221 = scmp.lt.s32.totalorder %s218, 3
          %s222 = scalar_select %p221, %s218, 3
          %s223 = smul.addr %s220, 4
          %s224 = sadd.s32 %s222, %s223
          %s225 = smul.addr %s224, 4
          %s226 = scalar_lea.vmem %s0, %s225
          %s227 = ssub.s32 1, %s22
          %s228 = smul.u32 %s227, %s23
          %s229 = sadd.s32 %s228, %s22
          %s230 = smul.u32 2, %s229
        $region36: #{mamba_block_forward.1} parent=31 // pred_fallthru
          _
      $region32: #{mamba_block_forward.1} parent=5 // pred_fallthru
        _
      %p231 = scmp.le.s32.totalorder 1, %s14
      %p232 = scmp.lt.s32.totalorder %s14, 9
      %p233 = pnand %p231, %p232
      %p234 = pneg %p233
      // Predicated region
      $region37: #{mamba_block_forward.1} parent=5 // pred_check
        _
      $region38: #{mamba_block_forward.1} parent=5 // pred_check_branch
        %236 = sbr.rel (%p233) target = $region40
      $region39: #{mamba_block_forward.1} parent=5 // pred_region
        %s237 = ssub.s32 %s14, 1
        %s238 = ssub.s32 1, %s25
        %s239 = smul.u32 %s238, %s26
        %s240 = sadd.s32 %s239, %s25
        %s241 = smul.u32 2, %s240
        %p242 = scmp.lt.s32.totalorder %s24, 1
        %s243 = scalar_select %p242, %s24, 1
        %p244 = scmp.lt.s32.totalorder %s241, 3
        %s245 = scalar_select %p244, %s241, 3
        %s246 = smul.addr %s243, 4
        %s247 = sadd.s32 %s245, %s246
        %s248 = smul.addr %s247, 4
        %s249 = scalar_lea.vmem %s0, %s248
        %p250 = pneg %p67
        %p251 = pneg %p64
        %p252 = pneg %p88
        %p253 = pneg %p85
        %p254 = pneg %p109
        %p255 = pneg %p106
        %p256 = pneg %p130
        %p257 = pneg %p127
        %p258 = pneg %p151
        %p259 = pneg %p148
        %p260 = pneg %p181
        %p261 = pneg %p178
        %s262 = sand.u32 %s168, 1
        %s263 = scalar_lea.sflag [#allocation5], %s262
        %s264 = sand.u32 %s168, 1
        %s265 = smul.addr %s264, 16
        %s266 = scalar_lea.vmem [#allocation4], %s265
        %s267 = ssub.s32 1, %s25
        %s268 = smul.u32 %s267, %s26
        %s269 = sadd.s32 %s268, %s25
        %s270 = smul.u32 2, %s269
        %p271 = scmp.lt.s32.totalorder %s24, 1
        %s272 = scalar_select %p271, %s24, 1
        %p273 = scmp.lt.s32.totalorder %s270, 3
        %s274 = scalar_select %p273, %s270, 3
        %s275 = smul.addr %s272, 4
        %s276 = sadd.s32 %s274, %s275
        %s277 = smul.addr %s276, 4
        %s278 = scalar_lea.vmem %s0, %s277
        %s279 = ssub.s32 1, %s25
        %s280 = smul.u32 %s279, %s26
        %s281 = sadd.s32 %s280, %s25
        %s282 = smul.u32 2, %s281
        %s283 = smul.u32 %s25, %s26
        %s284 = smul.u32 2, %s283
        %p286 = scmp.eq.s32.totalorder %s25, 0
        %p287 = scmp.eq.s32.totalorder %s26, 0
        %p288 = pnand %p286, %p287
        %p289 = pneg %p288
        // Predicated region
        $region41: #{mamba_block_forward.1} parent=39 // pred_check
          _
        $region42: #{mamba_block_forward.1} parent=39 // pred_check_branch
          %291 = sbr.rel (%p288) target = $region44
        $region43: #{mamba_block_forward.1} parent=39 // pred_region
          %292 = vst [vmem:[#allocation2] sm:$0xff] 0
          %293 = vst [vmem:[#allocation2 + $0x18] sm:$0xff] 0
          %294 = vst [vmem:[#allocation3] sm:$0xff] 0.0
          %295 = vst [vmem:[#allocation3 + $0x8] sm:$0xff] 0.0
          %296 = vst [vmem:[#allocation3 + $0x10] sm:$0xff] 0.0
          %297 = vst [vmem:[#allocation3 + $0x18] sm:$0xff] 0.0
          %298 = vst [vmem:[#allocation3 + $0x20] sm:$0xff] 0.0
          %299 = vst [vmem:[#allocation3 + $0x28] sm:$0xff] 0.0
          %300 = vst [vmem:[#allocation3 + $0x30] sm:$0xff] 0.0
          %301 = vst [vmem:[#allocation3 + $0x38] sm:$0xff] 0.0
          %302 = vst [vmem:[#allocation3 + $0x40] sm:$0xff] 0.0
          %303 = vst [vmem:[#allocation3 + $0x48] sm:$0xff] 0.0
          %304 = vst [vmem:[#allocation3 + $0x50] sm:$0xff] 0.0
          %305 = vst [vmem:[#allocation3 + $0x58] sm:$0xff] 0.0
          %306 = vst [vmem:[#allocation3 + $0x60] sm:$0xff] 0.0
          %307 = vst [vmem:[#allocation3 + $0x68] sm:$0xff] 0.0
          %308 = vst [vmem:[#allocation3 + $0x70] sm:$0xff] 0.0
          %309 = vst [vmem:[#allocation3 + $0x78] sm:$0xff] 0.0
        $region44: #{mamba_block_forward.1} parent=39 // pred_fallthru
          _
        // Predicated region
        $region45: #{mamba_block_forward.1} parent=39 // pred_check
          %p310 = pneg %p286
        $region46: #{mamba_block_forward.1} parent=39 // pred_check_branch
          %312 = sbr.rel (%p310) target = $region48
        $region47: #{mamba_block_forward.1} parent=39 // pred_region
          %v313 = vld [vmem:[%s278] sm:$0xf]
          %v314 = vld [vmem:[%s278 + $0x4] sm:$0xf]
          %v315 = vld [vmem:[%s1] sm:$0xf]
          %v316 = vld [vmem:[%s1 + $0x4] sm:$0xf]
          %v317 = vld [vmem:[%s1 + $0x8] sm:$0xf]
          %v318 = vld [vmem:[%s1 + $0xc] sm:$0xf]
          %v319 = vld [vmem:[%s2] sm:$0x1]
          %v321 = vlaneseq
          %v322 = vshrl.u32 %v321, 7
          %v323 = vsub.s32 0, %v322
          %v324 = vrot.slane %v319, %v323
          %v328 = vunpack.c.l.b16 %v313
          %v329 = vunpack.c.l.b16 %v314
          %v330 = vpack.c.b16 %v329, %v328
          %v335 = vunpack.c.l.b16 %v315
          %v336 = vunpack.c.l.b16 %v316
          %v337 = vunpack.c.l.b16 %v317
          %v338 = vunpack.c.l.b16 %v318
          %v339 = vpack.c.b16 %v336, %v335
          %v340 = vpack.c.b16 %v338, %v337
          %vm343 = vcmask 261120
          %v345 = vsel %vm343, %v330, 0
          %347 = vmatprep.subr.bf16.mxu0 0
          %348 = vmatpush1.bf16.msra.mxu0 %v339
          %349 = vmatprep.subr.bf16.mxu0 0
          %350 = vmatpush1.bf16.msra.mxu0 %v340
          %351 = vmatprep.subr.bf16.mxu0 0
          %352 = vmatpush1.bf16.msra.mxu0 0
          %353 = vmatprep.subr.bf16.mxu0 0
          %354 = vmatpush1.bf16.msra.mxu0 0
          %355 = vmatprep.subr.bf16.mxu0 0
          %356 = vmatpush1.bf16.msra.mxu0 0
          %357 = vmatprep.subr.bf16.mxu0 0
          %358 = vmatpush1.bf16.msra.mxu0 0
          %359 = vmatprep.subr.bf16.mxu0 0
          %360 = vmatpush1.bf16.msra.mxu0 0
          %361 = vmatprep.subr.bf16.mxu0 0
          %362 = vmatpush1.bf16.msra.mxu0 0
          %363 = vmatprep.subr.bf16.mxu0 0
          %364 = vmatpush1.bf16.msra.mxu0 0
          %365 = vmatprep.subr.bf16.mxu0 0
          %366 = vmatpush1.bf16.msra.mxu0 0
          %367 = vmatprep.subr.bf16.mxu0 0
          %368 = vmatpush1.bf16.msra.mxu0 0
          %369 = vmatprep.subr.bf16.mxu0 0
          %370 = vmatpush1.bf16.msra.mxu0 0
          %371 = vmatprep.subr.bf16.mxu0 0
          %372 = vmatpush1.bf16.msra.mxu0 0
          %373 = vmatprep.subr.bf16.mxu0 0
          %374 = vmatpush1.bf16.msra.mxu0 0
          %375 = vmatprep.subr.bf16.mxu0 0
          %376 = vmatpush1.bf16.msra.mxu0 0
          %377 = vmatprep.subr.bf16.mxu0 0
          %378 = vmatpush1.bf16.msra.mxu0 0
          %379 = vmatprep.mubr.bf16.mxu0 0
          %380 = vmatmul.mubr.bf16.gmra.mrb[0].mxu0 %v345
          %v381 = vpop.f32.mrb[0].mxu0
          %v382 = vadd.f32 %v324, %v381
          %v383 = vpop.f32.mrb[0].mxu0
          %v384 = vpop.f32.mrb[0].mxu0
          %v385 = vadd.f32 %v324, %v384
          %v386 = vpop.f32.mrb[0].mxu0
          %387 = vdwg.mxu0
          %v388 = vxor.u32 %v382, 2147483648
          %v389 = vxor.u32 %v385, 2147483648
          %v390 = vmul.f32 %v388, 1.442695
          %v391 = vpow.pop %v390
          %v392 = vmul.f32 %v389, 1.442695
          %v393 = vpow.pop %v392
          %v394 = vadd.f32 %v391, 1.0
          %v395 = vadd.f32 %v393, 1.0
          %v396 = vrcp.pop %v394
          %v397 = vmul.f32 1.0, %v396
          %v398 = vrcp.pop %v395
          %v399 = vmul.f32 1.0, %v398
          %v400 = vmul.f32 %v382, %v397
          %v401 = vmul.f32 %v385, %v399
          %v402 = vpack.c.bf16 %v401, %v400
          %s403 = smul.u32 %s26, 16
          %s404 = sadd.s32 %s403, 16
          %s405 = sshra.s32 %s404, 4
          %s406 = sand.u32 %s404, 15
          %s407 = smul.addr %s405, 8
          %s408 = scalar_lea.vmem [#allocation2], %s407
          %409 = vst [vmem:[%s408] sm:$0xff] %v402
        $region48: #{mamba_block_forward.1} parent=39 // pred_fallthru
          _
        %p410 = scmp.gt.s32.totalorder %s26, 0
        %p411 = pnand %p286, %p410
        %p412 = pneg %p411
        // Predicated region
        $region49: #{mamba_block_forward.1} parent=39 // pred_check
          _
        $region50: #{mamba_block_forward.1} parent=39 // pred_check_branch
          %414 = sbr.rel (%p411) target = $region52
        $region51: #{mamba_block_forward.1} parent=39 // pred_region
          %s415 = ssub.s32 %s26, 1
          %s416 = smul.u32 %s415, 16
          %s417 = sshra.s32 %s416, 4
          %s418 = sand.u32 %s416, 15
          %s419 = smul.addr %s417, 8
          %s420 = scalar_lea.vmem [#allocation2], %s419
          %v421 = vld [vmem:[%s420] sm:$0xff]
          %v422 = vld [vmem:[%s420 + $0x8] sm:$0xff]
          %v423 = vld [vmem:[%s420 + $0x10] sm:$0xff]
          %v424 = vld [vmem:[%s3] sm:$0xf]
          %v425 = vld [vmem:[%s3 + $0x4] sm:$0xf]
          %v426 = vld [vmem:[%s3 + $0x8] sm:$0xf]
          %v427 = vld [vmem:[%s3 + $0xc] sm:$0xf]
          %v428 = vld [vmem:[%s3 + $0x10] sm:$0xf]
          %v429 = vld [vmem:[%s3 + $0x14] sm:$0xf]
          %v430 = vld [vmem:[%s3 + $0x18] sm:$0xf]
          %v431 = vld [vmem:[%s3 + $0x1c] sm:$0xf]
          %v432 = vld [vmem:[%s3 + $0x20] sm:$0xf]
          %v433 = vld [vmem:[%s3 + $0x24] sm:$0xf]
          %v434 = vld [vmem:[%s3 + $0x28] sm:$0xf]
          %v435 = vld [vmem:[%s3 + $0x2c] sm:$0xf]
          %v436 = vld [vmem:[%s3 + $0x30] sm:$0xf]
          %v437 = vld [vmem:[%s3 + $0x34] sm:$0xf]
          %v438 = vld [vmem:[%s3 + $0x38] sm:$0xf]
          %v439 = vld [vmem:[%s3 + $0x3c] sm:$0xf]
          %s440 = scalar_lea.vmem %s3, 64
          %v441 = vld [vmem:[%s440] sm:$0xf]
          %v442 = vld [vmem:[%s440 + $0x4] sm:$0xf]
          %v443 = vld [vmem:[%s440 + $0x8] sm:$0xf]
          %v444 = vld [vmem:[%s440 + $0xc] sm:$0xf]
          %v445 = vld [vmem:[%s440 + $0x10] sm:$0xf]
          %v446 = vld [vmem:[%s440 + $0x14] sm:$0xf]
          %v447 = vld [vmem:[%s440 + $0x18] sm:$0xf]
          %v448 = vld [vmem:[%s440 + $0x1c] sm:$0xf]
          %v449 = vld [vmem:[%s440 + $0x20] sm:$0xf]
          %v450 = vld [vmem:[%s440 + $0x24] sm:$0xf]
          %v451 = vld [vmem:[%s440 + $0x28] sm:$0xf]
          %v452 = vld [vmem:[%s440 + $0x2c] sm:$0xf]
          %v453 = vld [vmem:[%s440 + $0x30] sm:$0xf]
          %v454 = vld [vmem:[%s440 + $0x34] sm:$0xf]
          %v455 = vld [vmem:[%s440 + $0x38] sm:$0xf]
          %v456 = vld [vmem:[%s440 + $0x3c] sm:$0xf]
          %v473 = vunpack.c.l.b16 %v441
          %v474 = vunpack.c.l.b16 %v442
          %v475 = vunpack.c.l.b16 %v443
          %v476 = vunpack.c.l.b16 %v444
          %v477 = vunpack.c.l.b16 %v445
          %v478 = vunpack.c.l.b16 %v446
          %v479 = vunpack.c.l.b16 %v447
          %v480 = vunpack.c.l.b16 %v448
          %v481 = vunpack.c.l.b16 %v449
          %v482 = vunpack.c.l.b16 %v450
          %v483 = vunpack.c.l.b16 %v451
          %v484 = vunpack.c.l.b16 %v452
          %v485 = vunpack.c.l.b16 %v453
          %v486 = vunpack.c.l.b16 %v454
          %v487 = vunpack.c.l.b16 %v455
          %v488 = vunpack.c.l.b16 %v456
          %v489 = vpack.c.b16 %v474, %v473
          %v490 = vpack.c.b16 %v476, %v475
          %v491 = vpack.c.b16 %v478, %v477
          %v492 = vpack.c.b16 %v480, %v479
          %v493 = vpack.c.b16 %v482, %v481
          %v494 = vpack.c.b16 %v484, %v483
          %v495 = vpack.c.b16 %v486, %v485
          %v496 = vpack.c.b16 %v488, %v487
          %505 = vmatprep.subr.bf16.mxu0 0
          %506 = vmatpush1.bf16.msra.mxu0 %v489
          %507 = vmatprep.subr.bf16.mxu0 0
          %508 = vmatpush1.bf16.msra.mxu0 %v490
          %509 = vmatprep.subr.bf16.mxu0 0
          %510 = vmatpush1.bf16.msra.mxu0 %v491
          %511 = vmatprep.subr.bf16.mxu0 0
          %512 = vmatpush1.bf16.msra.mxu0 %v492
          %513 = vmatprep.subr.bf16.mxu0 0
          %514 = vmatpush1.bf16.msra.mxu0 %v493
          %515 = vmatprep.subr.bf16.mxu0 0
          %516 = vmatpush1.bf16.msra.mxu0 %v494
          %517 = vmatprep.subr.bf16.mxu0 0
          %518 = vmatpush1.bf16.msra.mxu0 %v495
          %519 = vmatprep.subr.bf16.mxu0 0
          %520 = vmatpush1.bf16.msra.mxu0 %v496
          %521 = vmatprep.subr.bf16.mxu0 0
          %522 = vmatpush1.bf16.msra.mxu0 0
          %523 = vmatprep.subr.bf16.mxu0 0
          %524 = vmatpush1.bf16.msra.mxu0 0
          %525 = vmatprep.subr.bf16.mxu0 0
          %526 = vmatpush1.bf16.msra.mxu0 0
          %527 = vmatprep.subr.bf16.mxu0 0
          %528 = vmatpush1.bf16.msra.mxu0 0
          %529 = vmatprep.subr.bf16.mxu0 0
          %530 = vmatpush1.bf16.msra.mxu0 0
          %531 = vmatprep.subr.bf16.mxu0 0
          %532 = vmatpush1.bf16.msra.mxu0 0
          %533 = vmatprep.subr.bf16.mxu0 0
          %534 = vmatpush1.bf16.msra.mxu0 0
          %535 = vmatprep.subr.bf16.mxu0 0
          %536 = vmatpush1.bf16.msra.mxu0 0
          %537 = vmatprep.mubr.bf16.mxu0 0
          %538 = vmatmul.mubr.bf16.gmra.mrb[0].mxu0 %v422
          %v539 = vpop.f32.mrb[0].mxu0
          %v540 = vadd.f32 0.0, %v539
          %v541 = vpop.f32.mrb[0].mxu0
          %v542 = vpop.f32.mrb[0].mxu0
          %v543 = vadd.f32 0.0, %v542
          %v544 = vpop.f32.mrb[0].mxu0
          %545 = vdwg.mxu0
          %vm546 = vsmask.f32 256
          %v548 = vshrl.u32 %v421, 16
          %v550 = vrot.slane %v548, 7
          %v552 = vshrl.u32 %v422, 16
          %v554 = vrot.slane %v552, 7
          %v555 = vshll.u32 %v422, 16
          %v557 = vor.u32 %v554, %v555
          %v558 = vsel %vm546, %v550, %v557
          %v576 = vunpack.c.l.b16 %v424
          %v577 = vunpack.c.l.b16 %v425
          %v578 = vunpack.c.l.b16 %v426
          %v579 = vunpack.c.l.b16 %v427
          %v580 = vunpack.c.l.b16 %v428
          %v581 = vunpack.c.l.b16 %v429
          %v582 = vunpack.c.l.b16 %v430
          %v583 = vunpack.c.l.b16 %v431
          %v584 = vunpack.c.l.b16 %v432
          %v585 = vunpack.c.l.b16 %v433
          %v586 = vunpack.c.l.b16 %v434
          %v587 = vunpack.c.l.b16 %v435
          %v588 = vunpack.c.l.b16 %v436
          %v589 = vunpack.c.l.b16 %v437
          %v590 = vunpack.c.l.b16 %v438
          %v591 = vunpack.c.l.b16 %v439
          %v592 = vpack.c.b16 %v577, %v576
          %v593 = vpack.c.b16 %v579, %v578
          %v594 = vpack.c.b16 %v581, %v580
          %v595 = vpack.c.b16 %v583, %v582
          %v596 = vpack.c.b16 %v585, %v584
          %v597 = vpack.c.b16 %v587, %v586
          %v598 = vpack.c.b16 %v589, %v588
          %v599 = vpack.c.b16 %v591, %v590
          %608 = vmatprep.subr.bf16.mxu0 0
          %609 = vmatpush1.bf16.msra.mxu0 %v592
          %610 = vmatprep.subr.bf16.mxu0 0
          %611 = vmatpush1.bf16.msra.mxu0 %v593
          %612 = vmatprep.subr.bf16.mxu0 0
          %613 = vmatpush1.bf16.msra.mxu0 %v594
          %614 = vmatprep.subr.bf16.mxu0 0
          %615 = vmatpush1.bf16.msra.mxu0 %v595
          %616 = vmatprep.subr.bf16.mxu0 0
          %617 = vmatpush1.bf16.msra.mxu0 %v596
          %618 = vmatprep.subr.bf16.mxu0 0
          %619 = vmatpush1.bf16.msra.mxu0 %v597
          %620 = vmatprep.subr.bf16.mxu0 0
          %621 = vmatpush1.bf16.msra.mxu0 %v598
          %622 = vmatprep.subr.bf16.mxu0 0
          %623 = vmatpush1.bf16.msra.mxu0 %v599
          %624 = vmatprep.subr.bf16.mxu0 0
          %625 = vmatpush1.bf16.msra.mxu0 0
          %626 = vmatprep.subr.bf16.mxu0 0
          %627 = vmatpush1.bf16.msra.mxu0 0
          %628 = vmatprep.subr.bf16.mxu0 0
          %629 = vmatpush1.bf16.msra.mxu0 0
          %630 = vmatprep.subr.bf16.mxu0 0
          %631 = vmatpush1.bf16.msra.mxu0 0
          %632 = vmatprep.subr.bf16.mxu0 0
          %633 = vmatpush1.bf16.msra.mxu0 0
          %634 = vmatprep.subr.bf16.mxu0 0
          %635 = vmatpush1.bf16.msra.mxu0 0
          %636 = vmatprep.subr.bf16.mxu0 0
          %637 = vmatpush1.bf16.msra.mxu0 0
          %638 = vmatprep.subr.bf16.mxu0 0
          %639 = vmatpush1.bf16.msra.mxu0 0
          %640 = vmatprep.mubr.bf16.mxu0 0
          %641 = vmatmul.mubr.bf16.gmra.mrb[0].mxu0 %v558
          %v642 = vpop.f32.mrb[0].mxu0
          %v643 = vadd.f32 %v540, %v642
          %v644 = vpop.f32.mrb[0].mxu0
          %v645 = vpop.f32.mrb[0].mxu0
          %v646 = vadd.f32 %v543, %v645
          %v647 = vpop.f32.mrb[0].mxu0
          %648 = vdwg.mxu0
          %s649 = scalar_lea.vmem %s3, 128
          %v650 = vld [vmem:[%s649] sm:$0xf]
          %v651 = vld [vmem:[%s649 + $0x4] sm:$0xf]
          %v652 = vld [vmem:[%s649 + $0x8] sm:$0xf]
          %v653 = vld [vmem:[%s649 + $0xc] sm:$0xf]
          %v654 = vld [vmem:[%s649 + $0x10] sm:$0xf]
          %v655 = vld [vmem:[%s649 + $0x14] sm:$0xf]
          %v656 = vld [vmem:[%s649 + $0x18] sm:$0xf]
          %v657 = vld [vmem:[%s649 + $0x1c] sm:$0xf]
          %v658 = vld [vmem:[%s649 + $0x20] sm:$0xf]
          %v659 = vld [vmem:[%s649 + $0x24] sm:$0xf]
          %v660 = vld [vmem:[%s649 + $0x28] sm:$0xf]
          %v661 = vld [vmem:[%s649 + $0x2c] sm:$0xf]
          %v662 = vld [vmem:[%s649 + $0x30] sm:$0xf]
          %v663 = vld [vmem:[%s649 + $0x34] sm:$0xf]
          %v664 = vld [vmem:[%s649 + $0x38] sm:$0xf]
          %v665 = vld [vmem:[%s649 + $0x3c] sm:$0xf]
          %vm666 = vsmask.f32 7424
          %v667 = vrot.slane %v555, 1
          %v668 = vor.u32 %v552, %v667
          %v670 = vshll.u32 %v423, 16
          %v672 = vrot.slane %v670, 1
          %v673 = vsel %vm666, %v668, %v672
          %v691 = vunpack.c.l.b16 %v650
          %v692 = vunpack.c.l.b16 %v651
          %v693 = vunpack.c.l.b16 %v652
          %v694 = vunpack.c.l.b16 %v653
          %v695 = vunpack.c.l.b16 %v654
          %v696 = vunpack.c.l.b16 %v655
          %v697 = vunpack.c.l.b16 %v656
          %v698 = vunpack.c.l.b16 %v657
          %v699 = vunpack.c.l.b16 %v658
          %v700 = vunpack.c.l.b16 %v659
          %v701 = vunpack.c.l.b16 %v660
          %v702 = vunpack.c.l.b16 %v661
          %v703 = vunpack.c.l.b16 %v662
          %v704 = vunpack.c.l.b16 %v663
          %v705 = vunpack.c.l.b16 %v664
          %v706 = vunpack.c.l.b16 %v665
          %v707 = vpack.c.b16 %v692, %v691
          %v708 = vpack.c.b16 %v694, %v693
          %v709 = vpack.c.b16 %v696, %v695
          %v710 = vpack.c.b16 %v698, %v697
          %v711 = vpack.c.b16 %v700, %v699
          %v712 = vpack.c.b16 %v702, %v701
          %v713 = vpack.c.b16 %v704, %v703
          %v714 = vpack.c.b16 %v706, %v705
          %723 = vmatprep.subr.bf16.mxu0 0
          %724 = vmatpush1.bf16.msra.mxu0 %v707
          %725 = vmatprep.subr.bf16.mxu0 0
          %726 = vmatpush1.bf16.msra.mxu0 %v708
          %727 = vmatprep.subr.bf16.mxu0 0
          %728 = vmatpush1.bf16.msra.mxu0 %v709
          %729 = vmatprep.subr.bf16.mxu0 0
          %730 = vmatpush1.bf16.msra.mxu0 %v710
          %731 = vmatprep.subr.bf16.mxu0 0
          %732 = vmatpush1.bf16.msra.mxu0 %v711
          %733 = vmatprep.subr.bf16.mxu0 0
          %734 = vmatpush1.bf16.msra.mxu0 %v712
          %735 = vmatprep.subr.bf16.mxu0 0
          %736 = vmatpush1.bf16.msra.mxu0 %v713
          %737 = vmatprep.subr.bf16.mxu0 0
          %738 = vmatpush1.bf16.msra.mxu0 %v714
          %739 = vmatprep.subr.bf16.mxu0 0
          %740 = vmatpush1.bf16.msra.mxu0 0
          %741 = vmatprep.subr.bf16.mxu0 0
          %742 = vmatpush1.bf16.msra.mxu0 0
          %743 = vmatprep.subr.bf16.mxu0 0
          %744 = vmatpush1.bf16.msra.mxu0 0
          %745 = vmatprep.subr.bf16.mxu0 0
          %746 = vmatpush1.bf16.msra.mxu0 0
          %747 = vmatprep.subr.bf16.mxu0 0
          %748 = vmatpush1.bf16.msra.mxu0 0
          %749 = vmatprep.subr.bf16.mxu0 0
          %750 = vmatpush1.bf16.msra.mxu0 0
          %751 = vmatprep.subr.bf16.mxu0 0
          %752 = vmatpush1.bf16.msra.mxu0 0
          %753 = vmatprep.subr.bf16.mxu0 0
          %754 = vmatpush1.bf16.msra.mxu0 0
          %755 = vmatprep.mubr.bf16.mxu0 0
          %756 = vmatmul.mubr.bf16.gmra.mrb[0].mxu0 %v673
          %v757 = vpop.f32.mrb[0].mxu0
          %v758 = vadd.f32 0.0, %v757
          %v759 = vpop.f32.mrb[0].mxu0
          %v760 = vpop.f32.mrb[0].mxu0
          %v761 = vadd.f32 0.0, %v760
          %v762 = vpop.f32.mrb[0].mxu0
          %763 = vdwg.mxu0
          %v764 = vadd.f32 %v643, %v758
          %v765 = vadd.f32 %v646, %v761
          %v766 = vld [vmem:[%s4] sm:$0x1]
          %v768 = vlaneseq
          %v769 = vshrl.u32 %v768, 7
          %v770 = vsub.s32 0, %v769
          %v771 = vrot.slane %v766, %v770
          %v773 = vadd.f32 %v764, %v771
          %v774 = vadd.f32 %v765, %v771
          %v775 = vxor.u32 %v773, 2147483648
          %v776 = vxor.u32 %v774, 2147483648
          %v777 = vmul.f32 %v775, 1.442695
          %v778 = vpow.pop %v777
          %v779 = vmul.f32 %v776, 1.442695
          %v780 = vpow.pop %v779
          %v781 = vadd.f32 %v778, 1.0
          %v782 = vadd.f32 %v780, 1.0
          %v783 = vrcp.pop %v781
          %v784 = vmul.f32 1.0, %v783
          %v785 = vrcp.pop %v782
          %v786 = vmul.f32 1.0, %v785
          %v787 = vmul.f32 %v773, %v784
          %v788 = vmul.f32 %v774, %v786
          %s789 = sshra.s32 %s416, 3
          %s790 = sand.u32 %s416, 7
          %s791 = smul.addr %s789, 4
          %s792 = scalar_lea.vmem %s1, %s791
          %v793 = vld [vmem:[%s792] sm:$0xf]
          %v794 = vld [vmem:[%s792 + $0x4] sm:$0xf]
          %v795 = vld [vmem:[#allocation3] sm:$0xff]
          %v796 = vld [vmem:[#allocation3 + $0x8] sm:$0xff]
          %v797 = vld [vmem:[#allocation3 + $0x10] sm:$0xff]
          %v798 = vld [vmem:[#allocation3 + $0x18] sm:$0xff]
          %v799 = vld [vmem:[#allocation3 + $0x20] sm:$0xff]
          %v800 = vld [vmem:[#allocation3 + $0x28] sm:$0xff]
          %v801 = vld [vmem:[#allocation3 + $0x30] sm:$0xff]
          %v802 = vld [vmem:[#allocation3 + $0x38] sm:$0xff]
          %v803 = vld [vmem:[#allocation3 + $0x40] sm:$0xff]
          %v804 = vld [vmem:[#allocation3 + $0x48] sm:$0xff]
          %v805 = vld [vmem:[#allocation3 + $0x50] sm:$0xff]
          %v806 = vld [vmem:[#allocation3 + $0x58] sm:$0xff]
          %v807 = vld [vmem:[#allocation3 + $0x60] sm:$0xff]
          %v808 = vld [vmem:[#allocation3 + $0x68] sm:$0xff]
          %v809 = vld [vmem:[#allocation3 + $0x70] sm:$0xff]
          %v810 = vld [vmem:[#allocation3 + $0x78] sm:$0xff]
          %v811 = vpack.c.bf16 %v788, %v787
          %812 = vxpose.xlu0.c.b16.start [1/8] %v811, 128
          %813 = vxpose.xlu0.c.b16.cont [2/8] 0, 128
          %814 = vxpose.xlu0.c.b16.cont [3/8] 0, 128
          %815 = vxpose.xlu0.c.b16.cont [4/8] 0, 128
          %816 = vxpose.xlu0.c.b16.cont [5/8] 0, 128
          %817 = vxpose.xlu0.c.b16.cont [6/8] 0, 128
          %818 = vxpose.xlu0.c.b16.cont [7/8] 0, 128
          %819 = vxpose.xlu0.c.b16.end [8/8] 0, 128
          %v820 = vpop.trf.xlu0
          %v821 = vpop.trf.xlu0
          %v822 = vpop.trf.xlu0
          %v823 = vpop.trf.xlu0
          %v824 = vpop.trf.xlu0
          %v825 = vpop.trf.xlu0
          %v826 = vpop.trf.xlu0
          %v827 = vpop.trf.xlu0
          %v830 = vunpack.c.l.b16 %v793
          %v831 = vunpack.c.l.b16 %v794
          %v832 = vpack.c.b16 %v831, %v830
          %vm834 = vcmask 130048
          %v836 = vsel %vm834, %v820, 0
          %v839 = vsel %vm834, %v821, 0
          %v842 = vsel %vm834, %v822, 0
          %v845 = vsel %vm834, %v823, 0
          %v848 = vsel %vm834, %v824, 0
          %v851 = vsel %vm834, %v825, 0
          %v854 = vsel %vm834, %v826, 0
          %v857 = vsel %vm834, %v827, 0
          %859 = vmatprep.subr.bf16.mxu0 0
          %860 = vmatpush1.bf16.msra.mxu0 %v832
          %861 = vmatprep.subr.bf16.mxu0 0
          %862 = vmatpush1.bf16.msra.mxu0 0
          %863 = vmatprep.subr.bf16.mxu0 0
          %864 = vmatpush1.bf16.msra.mxu0 0
          %865 = vmatprep.subr.bf16.mxu0 0
          %866 = vmatpush1.bf16.msra.mxu0 0
          %867 = vmatprep.subr.bf16.mxu0 0
          %868 = vmatpush1.bf16.msra.mxu0 0
          %869 = vmatprep.subr.bf16.mxu0 0
          %870 = vmatpush1.bf16.msra.mxu0 0
          %871 = vmatprep.subr.bf16.mxu0 0
          %872 = vmatpush1.bf16.msra.mxu0 0
          %873 = vmatprep.subr.bf16.mxu0 0
          %874 = vmatpush1.bf16.msra.mxu0 0
          %875 = vmatprep.subr.bf16.mxu0 0
          %876 = vmatpush1.bf16.msra.mxu0 0
          %877 = vmatprep.subr.bf16.mxu0 0
          %878 = vmatpush1.bf16.msra.mxu0 0
          %879 = vmatprep.subr.bf16.mxu0 0
          %880 = vmatpush1.bf16.msra.mxu0 0
          %881 = vmatprep.subr.bf16.mxu0 0
          %882 = vmatpush1.bf16.msra.mxu0 0
          %883 = vmatprep.subr.bf16.mxu0 0
          %884 = vmatpush1.bf16.msra.mxu0 0
          %885 = vmatprep.subr.bf16.mxu0 0
          %886 = vmatpush1.bf16.msra.mxu0 0
          %887 = vmatprep.subr.bf16.mxu0 0
          %888 = vmatpush1.bf16.msra.mxu0 0
          %889 = vmatprep.subr.bf16.mxu0 0
          %890 = vmatpush1.bf16.msra.mxu0 0
          %891 = vmatprep.mubr.bf16.mxu0 0
          %892 = vmatmul.mubr.bf16.gmra.mrb[0].mxu0 %v836
          %v893 = vpop.f32.mrb[0].mxu0
          %v894 = vadd.f32 0.0, %v893
          %v895 = vpop.f32.mrb[0].mxu0
          %v896 = vpop.f32.mrb[0].mxu0
          %v897 = vadd.f32 0.0, %v896
          %v898 = vpop.f32.mrb[0].mxu0
          %899 = vmatprep.mubr.bf16.mxu0 0
          %900 = vmatmul.mubr.bf16.gmra.mrb[0].mxu0 %v839
          %v901 = vpop.f32.mrb[0].mxu0
          %v902 = vadd.f32 0.0, %v901
          %v903 = vpop.f32.mrb[0].mxu0
          %v904 = vpop.f32.mrb[0].mxu0
          %v905 = vadd.f32 0.0, %v904
          %v906 = vpop.f32.mrb[0].mxu0
          %907 = vmatprep.mubr.bf16.mxu0 0
          %908 = vmatmul.mubr.bf16.gmra.mrb[0].mxu0 %v842
          %v909 = vpop.f32.mrb[0].mxu0
          %v910 = vadd.f32 0.0, %v909
          %v911 = vpop.f32.mrb[0].mxu0
          %v912 = vpop.f32.mrb[0].mxu0
          %v913 = vadd.f32 0.0, %v912
          %v914 = vpop.f32.mrb[0].mxu0
          %915 = vmatprep.mubr.bf16.mxu0 0
          %916 = vmatmul.mubr.bf16.gmra.mrb[0].mxu0 %v845
          %v917 = vpop.f32.mrb[0].mxu0
          %v918 = vadd.f32 0.0, %v917
          %v919 = vpop.f32.mrb[0].mxu0
          %v920 = vpop.f32.mrb[0].mxu0
          %v921 = vadd.f32 0.0, %v920
          %v922 = vpop.f32.mrb[0].mxu0
          %923 = vmatprep.mubr.bf16.mxu0 0
          %924 = vmatmul.mubr.bf16.gmra.mrb[0].mxu0 %v848
          %v925 = vpop.f32.mrb[0].mxu0
          %v926 = vadd.f32 0.0, %v925
          %v927 = vpop.f32.mrb[0].mxu0
          %v928 = vpop.f32.mrb[0].mxu0
          %v929 = vadd.f32 0.0, %v928
          %v930 = vpop.f32.mrb[0].mxu0
          %931 = vmatprep.mubr.bf16.mxu0 0
          %932 = vmatmul.mubr.bf16.gmra.mrb[0].mxu0 %v851
          %v933 = vpop.f32.mrb[0].mxu0
          %v934 = vadd.f32 0.0, %v933
          %v935 = vpop.f32.mrb[0].mxu0
          %v936 = vpop.f32.mrb[0].mxu0
          %v937 = vadd.f32 0.0, %v936
          %v938 = vpop.f32.mrb[0].mxu0
          %939 = vmatprep.mubr.bf16.mxu0 0
          %940 = vmatmul.mubr.bf16.gmra.mrb[0].mxu0 %v854
          %v941 = vpop.f32.mrb[0].mxu0
          %v942 = vadd.f32 0.0, %v941
          %v943 = vpop.f32.mrb[0].mxu0
          %v944 = vpop.f32.mrb[0].mxu0
          %v945 = vadd.f32 0.0, %v944
          %v946 = vpop.f32.mrb[0].mxu0
          %947 = vmatprep.mubr.bf16.mxu0 0
          %948 = vmatmul.mubr.bf16.gmra.mrb[0].mxu0 %v857
          %v949 = vpop.f32.mrb[0].mxu0
          %v950 = vadd.f32 0.0, %v949
          %v951 = vpop.f32.mrb[0].mxu0
          %v952 = vpop.f32.mrb[0].mxu0
          %v953 = vadd.f32 0.0, %v952
          %v954 = vpop.f32.mrb[0].mxu0
          %955 = vdwg.mxu0
          %v956 = vadd.f32 %v795, %v894
          %v957 = vadd.f32 %v796, %v897
          %v958 = vadd.f32 %v797, %v902
          %v959 = vadd.f32 %v798, %v905
          %v960 = vadd.f32 %v799, %v910
          %v961 = vadd.f32 %v800, %v913
          %v962 = vadd.f32 %v801, %v918
          %v963 = vadd.f32 %v802, %v921
          %v964 = vadd.f32 %v803, %v926
          %v965 = vadd.f32 %v804, %v929
          %v966 = vadd.f32 %v805, %v934
          %v967 = vadd.f32 %v806, %v937
          %v968 = vadd.f32 %v807, %v942
          %v969 = vadd.f32 %v808, %v945
          %v970 = vadd.f32 %v809, %v950
          %v971 = vadd.f32 %v810, %v953
          %972 = vst [vmem:[#allocation3] sm:$0xff] %v956
          %973 = vst [vmem:[#allocation3 + $0x8] sm:$0xff] %v957
          %974 = vst [vmem:[#allocation3 + $0x10] sm:$0xff] %v958
          %975 = vst [vmem:[#allocation3 + $0x18] sm:$0xff] %v959
          %976 = vst [vmem:[#allocation3 + $0x20] sm:$0xff] %v960
          %977 = vst [vmem:[#allocation3 + $0x28] sm:$0xff] %v961
          %978 = vst [vmem:[#allocation3 + $0x30] sm:$0xff] %v962
          %979 = vst [vmem:[#allocation3 + $0x38] sm:$0xff] %v963
          %980 = vst [vmem:[#allocation3 + $0x40] sm:$0xff] %v964
          %981 = vst [vmem:[#allocation3 + $0x48] sm:$0xff] %v965
          %982 = vst [vmem:[#allocation3 + $0x50] sm:$0xff] %v966
          %983 = vst [vmem:[#allocation3 + $0x58] sm:$0xff] %v967
          %984 = vst [vmem:[#allocation3 + $0x60] sm:$0xff] %v968
          %985 = vst [vmem:[#allocation3 + $0x68] sm:$0xff] %v969
          %986 = vst [vmem:[#allocation3 + $0x70] sm:$0xff] %v970
          %987 = vst [vmem:[#allocation3 + $0x78] sm:$0xff] %v971
        $region52: #{mamba_block_forward.1} parent=39 // pred_fallthru
          _
        %p988 = scmp.eq.s32.totalorder %s26, 1
        %p989 = pnand %p286, %p988
        %p990 = pneg %p989
        // Predicated region
        $region53: #{mamba_block_forward.1} parent=39 // pred_check
          _
        $region54: #{mamba_block_forward.1} parent=39 // pred_check_branch
          %992 = sbr.rel (%p989) target = $region56
        $region55: #{mamba_block_forward.1} parent=39 // pred_region
          %s993 = scalar_lea.vmem [#allocation2], 8
          %v994 = vld [vmem:[%s993] sm:$0xff]
          %v995 = vld [vmem:[%s993 + $0x8] sm:$0xff]
          %v996 = vld [vmem:[%s993 + $0x10] sm:$0xff]
          %v997 = vld [vmem:[%s3] sm:$0xf]
          %v998 = vld [vmem:[%s3 + $0x4] sm:$0xf]
          %v999 = vld [vmem:[%s3 + $0x8] sm:$0xf]
          %v1000 = vld [vmem:[%s3 + $0xc] sm:$0xf]
          %v1001 = vld [vmem:[%s3 + $0x10] sm:$0xf]
          %v1002 = vld [vmem:[%s3 + $0x14] sm:$0xf]
          %v1003 = vld [vmem:[%s3 + $0x18] sm:$0xf]
          %v1004 = vld [vmem:[%s3 + $0x1c] sm:$0xf]
          %v1005 = vld [vmem:[%s3 + $0x20] sm:$0xf]
          %v1006 = vld [vmem:[%s3 + $0x24] sm:$0xf]
          %v1007 = vld [vmem:[%s3 + $0x28] sm:$0xf]
          %v1008 = vld [vmem:[%s3 + $0x2c] sm:$0xf]
          %v1009 = vld [vmem:[%s3 + $0x30] sm:$0xf]
          %v1010 = vld [vmem:[%s3 + $0x34] sm:$0xf]
          %v1011 = vld [vmem:[%s3 + $0x38] sm:$0xf]
          %v1012 = vld [vmem:[%s3 + $0x3c] sm:$0xf]
          %s1013 = scalar_lea.vmem %s3, 64
          %v1014 = vld [vmem:[%s1013] sm:$0xf]
          %v1015 = vld [vmem:[%s1013 + $0x4] sm:$0xf]
          %v1016 = vld [vmem:[%s1013 + $0x8] sm:$0xf]
          %v1017 = vld [vmem:[%s1013 + $0xc] sm:$0xf]
          %v1018 = vld [vmem:[%s1013 + $0x10] sm:$0xf]
          %v1019 = vld [vmem:[%s1013 + $0x14] sm:$0xf]
          %v1020 = vld [vmem:[%s1013 + $0x18] sm:$0xf]
          %v1021 = vld [vmem:[%s1013 + $0x1c] sm:$0xf]
          %v1022 = vld [vmem:[%s1013 + $0x20] sm:$0xf]
          %v1023 = vld [vmem:[%s1013 + $0x24] sm:$0xf]
          %v1024 = vld [vmem:[%s1013 + $0x28] sm:$0xf]
          %v1025 = vld [vmem:[%s1013 + $0x2c] sm:$0xf]
          %v1026 = vld [vmem:[%s1013 + $0x30] sm:$0xf]
          %v1027 = vld [vmem:[%s1013 + $0x34] sm:$0xf]
          %v1028 = vld [vmem:[%s1013 + $0x38] sm:$0xf]
          %v1029 = vld [vmem:[%s1013 + $0x3c] sm:$0xf]
          %v1046 = vunpack.c.l.b16 %v1014
          %v1047 = vunpack.c.l.b16 %v1015
          %v1048 = vunpack.c.l.b16 %v1016
          %v1049 = vunpack.c.l.b16 %v1017
          %v1050 = vunpack.c.l.b16 %v1018
          %v1051 = vunpack.c.l.b16 %v1019
          %v1052 = vunpack.c.l.b16 %v1020
          %v1053 = vunpack.c.l.b16 %v1021
          %v1054 = vunpack.c.l.b16 %v1022
          %v1055 = vunpack.c.l.b16 %v1023
          %v1056 = vunpack.c.l.b16 %v1024
          %v1057 = vunpack.c.l.b16 %v1025
          %v1058 = vunpack.c.l.b16 %v1026
          %v1059 = vunpack.c.l.b16 %v1027
          %v1060 = vunpack.c.l.b16 %v1028
          %v1061 = vunpack.c.l.b16 %v1029
          %v1062 = vpack.c.b16 %v1047, %v1046
          %v1063 = vpack.c.b16 %v1049, %v1048
          %v1064 = vpack.c.b16 %v1051, %v1050
          %v1065 = vpack.c.b16 %v1053, %v1052
          %v1066 = vpack.c.b16 %v1055, %v1054
          %v1067 = vpack.c.b16 %v1057, %v1056
          %v1068 = vpack.c.b16 %v1059, %v1058
          %v1069 = vpack.c.b16 %v1061, %v1060
          %1078 = vmatprep.subr.bf16.mxu0 0
          %1079 = vmatpush1.bf16.msra.mxu0 %v1062
          %1080 = vmatprep.subr.bf16.mxu0 0
          %1081 = vmatpush1.bf16.msra.mxu0 %v1063
          %1082 = vmatprep.subr.bf16.mxu0 0
          %1083 = vmatpush1.bf16.msra.mxu0 %v1064
          %1084 = vmatprep.subr.bf16.mxu0 0
          %1085 = vmatpush1.bf16.msra.mxu0 %v1065
          %1086 = vmatprep.subr.bf16.mxu0 0
          %1087 = vmatpush1.bf16.msra.mxu0 %v1066
          %1088 = vmatprep.subr.bf16.mxu0 0
          %1089 = vmatpush1.bf16.msra.mxu0 %v1067
          %1090 = vmatprep.subr.bf16.mxu0 0
          %1091 = vmatpush1.bf16.msra.mxu0 %v1068
          %1092 = vmatprep.subr.bf16.mxu0 0
          %1093 = vmatpush1.bf16.msra.mxu0 %v1069
          %1094 = vmatprep.subr.bf16.mxu0 0
          %1095 = vmatpush1.bf16.msra.mxu0 0
          %1096 = vmatprep.subr.bf16.mxu0 0
          %1097 = vmatpush1.bf16.msra.mxu0 0
          %1098 = vmatprep.subr.bf16.mxu0 0
          %1099 = vmatpush1.bf16.msra.mxu0 0
          %1100 = vmatprep.subr.bf16.mxu0 0
          %1101 = vmatpush1.bf16.msra.mxu0 0
          %1102 = vmatprep.subr.bf16.mxu0 0
          %1103 = vmatpush1.bf16.msra.mxu0 0
          %1104 = vmatprep.subr.bf16.mxu0 0
          %1105 = vmatpush1.bf16.msra.mxu0 0
          %1106 = vmatprep.subr.bf16.mxu0 0
          %1107 = vmatpush1.bf16.msra.mxu0 0
          %1108 = vmatprep.subr.bf16.mxu0 0
          %1109 = vmatpush1.bf16.msra.mxu0 0
          %1110 = vmatprep.mubr.bf16.mxu0 0
          %1111 = vmatmul.mubr.bf16.gmra.mrb[0].mxu0 %v995
          %v1112 = vpop.f32.mrb[0].mxu0
          %v1113 = vadd.f32 0.0, %v1112
          %v1114 = vpop.f32.mrb[0].mxu0
          %v1115 = vpop.f32.mrb[0].mxu0
          %v1116 = vadd.f32 0.0, %v1115
          %v1117 = vpop.f32.mrb[0].mxu0
          %1118 = vdwg.mxu0
          %vm1119 = vsmask.f32 256
          %v1121 = vshrl.u32 %v994, 16
          %v1123 = vrot.slane %v1121, 7
          %v1125 = vshrl.u32 %v995, 16
          %v1127 = vrot.slane %v1125, 7
          %v1128 = vshll.u32 %v995, 16
          %v1130 = vor.u32 %v1127, %v1128
          %v1131 = vsel %vm1119, %v1123, %v1130
          %v1149 = vunpack.c.l.b16 %v997
          %v1150 = vunpack.c.l.b16 %v998
          %v1151 = vunpack.c.l.b16 %v999
          %v1152 = vunpack.c.l.b16 %v1000
          %v1153 = vunpack.c.l.b16 %v1001
          %v1154 = vunpack.c.l.b16 %v1002
          %v1155 = vunpack.c.l.b16 %v1003
          %v1156 = vunpack.c.l.b16 %v1004
          %v1157 = vunpack.c.l.b16 %v1005
          %v1158 = vunpack.c.l.b16 %v1006
          %v1159 = vunpack.c.l.b16 %v1007
          %v1160 = vunpack.c.l.b16 %v1008
          %v1161 = vunpack.c.l.b16 %v1009
          %v1162 = vunpack.c.l.b16 %v1010
          %v1163 = vunpack.c.l.b16 %v1011
          %v1164 = vunpack.c.l.b16 %v1012
          %v1165 = vpack.c.b16 %v1150, %v1149
          %v1166 = vpack.c.b16 %v1152, %v1151
          %v1167 = vpack.c.b16 %v1154, %v1153
          %v1168 = vpack.c.b16 %v1156, %v1155
          %v1169 = vpack.c.b16 %v1158, %v1157
          %v1170 = vpack.c.b16 %v1160, %v1159
          %v1171 = vpack.c.b16 %v1162, %v1161
          %v1172 = vpack.c.b16 %v1164, %v1163
          %1181 = vmatprep.subr.bf16.mxu0 0
          %1182 = vmatpush1.bf16.msra.mxu0 %v1165
          %1183 = vmatprep.subr.bf16.mxu0 0
          %1184 = vmatpush1.bf16.msra.mxu0 %v1166
          %1185 = vmatprep.subr.bf16.mxu0 0
          %1186 = vmatpush1.bf16.msra.mxu0 %v1167
          %1187 = vmatprep.subr.bf16.mxu0 0
          %1188 = vmatpush1.bf16.msra.mxu0 %v1168
          %1189 = vmatprep.subr.bf16.mxu0 0
          %1190 = vmatpush1.bf16.msra.mxu0 %v1169
          %1191 = vmatprep.subr.bf16.mxu0 0
          %1192 = vmatpush1.bf16.msra.mxu0 %v1170
          %1193 = vmatprep.subr.bf16.mxu0 0
          %1194 = vmatpush1.bf16.msra.mxu0 %v1171
          %1195 = vmatprep.subr.bf16.mxu0 0
          %1196 = vmatpush1.bf16.msra.mxu0 %v1172
          %1197 = vmatprep.subr.bf16.mxu0 0
          %1198 = vmatpush1.bf16.msra.mxu0 0
          %1199 = vmatprep.subr.bf16.mxu0 0
          %1200 = vmatpush1.bf16.msra.mxu0 0
          %1201 = vmatprep.subr.bf16.mxu0 0
          %1202 = vmatpush1.bf16.msra.mxu0 0
          %1203 = vmatprep.subr.bf16.mxu0 0
          %1204 = vmatpush1.bf16.msra.mxu0 0
          %1205 = vmatprep.subr.bf16.mxu0 0
          %1206 = vmatpush1.bf16.msra.mxu0 0
          %1207 = vmatprep.subr.bf16.mxu0 0
          %1208 = vmatpush1.bf16.msra.mxu0 0
          %1209 = vmatprep.subr.bf16.mxu0 0
          %1210 = vmatpush1.bf16.msra.mxu0 0
          %1211 = vmatprep.subr.bf16.mxu0 0
          %1212 = vmatpush1.bf16.msra.mxu0 0
          %1213 = vmatprep.mubr.bf16.mxu0 0
          %1214 = vmatmul.mubr.bf16.gmra.mrb[0].mxu0 %v1131
          %v1215 = vpop.f32.mrb[0].mxu0
          %v1216 = vadd.f32 %v1113, %v1215
          %v1217 = vpop.f32.mrb[0].mxu0
          %v1218 = vpop.f32.mrb[0].mxu0
          %v1219 = vadd.f32 %v1116, %v1218
          %v1220 = vpop.f32.mrb[0].mxu0
          %1221 = vdwg.mxu0
          %s1222 = scalar_lea.vmem %s3, 128
          %v1223 = vld [vmem:[%s1222] sm:$0xf]
          %v1224 = vld [vmem:[%s1222 + $0x4] sm:$0xf]
          %v1225 = vld [vmem:[%s1222 + $0x8] sm:$0xf]
          %v1226 = vld [vmem:[%s1222 + $0xc] sm:$0xf]
          %v1227 = vld [vmem:[%s1222 + $0x10] sm:$0xf]
          %v1228 = vld [vmem:[%s1222 + $0x14] sm:$0xf]
          %v1229 = vld [vmem:[%s1222 + $0x18] sm:$0xf]
          %v1230 = vld [vmem:[%s1222 + $0x1c] sm:$0xf]
          %v1231 = vld [vmem:[%s1222 + $0x20] sm:$0xf]
          %v1232 = vld [vmem:[%s1222 + $0x24] sm:$0xf]
          %v1233 = vld [vmem:[%s1222 + $0x28] sm:$0xf]
          %v1234 = vld [vmem:[%s1222 + $0x2c] sm:$0xf]
          %v1235 = vld [vmem:[%s1222 + $0x30] sm:$0xf]
          %v1236 = vld [vmem:[%s1222 + $0x34] sm:$0xf]
          %v1237 = vld [vmem:[%s1222 + $0x38] sm:$0xf]
          %v1238 = vld [vmem:[%s1222 + $0x3c] sm:$0xf]
          %vm1239 = vsmask.f32 7424
          %v1240 = vrot.slane %v1128, 1
          %v1241 = vor.u32 %v1125, %v1240
          %v1243 = vshll.u32 %v996, 16
          %v1245 = vrot.slane %v1243, 1
          %v1246 = vsel %vm1239, %v1241, %v1245
          %v1264 = vunpack.c.l.b16 %v1223
          %v1265 = vunpack.c.l.b16 %v1224
          %v1266 = vunpack.c.l.b16 %v1225
          %v1267 = vunpack.c.l.b16 %v1226
          %v1268 = vunpack.c.l.b16 %v1227
          %v1269 = vunpack.c.l.b16 %v1228
          %v1270 = vunpack.c.l.b16 %v1229
          %v1271 = vunpack.c.l.b16 %v1230
          %v1272 = vunpack.c.l.b16 %v1231
          %v1273 = vunpack.c.l.b16 %v1232
          %v1274 = vunpack.c.l.b16 %v1233
          %v1275 = vunpack.c.l.b16 %v1234
          %v1276 = vunpack.c.l.b16 %v1235
          %v1277 = vunpack.c.l.b16 %v1236
          %v1278 = vunpack.c.l.b16 %v1237
          %v1279 = vunpack.c.l.b16 %v1238
          %v1280 = vpack.c.b16 %v1265, %v1264
          %v1281 = vpack.c.b16 %v1267, %v1266
          %v1282 = vpack.c.b16 %v1269, %v1268
          %v1283 = vpack.c.b16 %v1271, %v1270
          %v1284 = vpack.c.b16 %v1273, %v1272
          %v1285 = vpack.c.b16 %v1275, %v1274
          %v1286 = vpack.c.b16 %v1277, %v1276
          %v1287 = vpack.c.b16 %v1279, %v1278
          %1296 = vmatprep.subr.bf16.mxu0 0
          %1297 = vmatpush1.bf16.msra.mxu0 %v1280
          %1298 = vmatprep.subr.bf16.mxu0 0
          %1299 = vmatpush1.bf16.msra.mxu0 %v1281
          %1300 = vmatprep.subr.bf16.mxu0 0
          %1301 = vmatpush1.bf16.msra.mxu0 %v1282
          %1302 = vmatprep.subr.bf16.mxu0 0
          %1303 = vmatpush1.bf16.msra.mxu0 %v1283
          %1304 = vmatprep.subr.bf16.mxu0 0
          %1305 = vmatpush1.bf16.msra.mxu0 %v1284
          %1306 = vmatprep.subr.bf16.mxu0 0
          %1307 = vmatpush1.bf16.msra.mxu0 %v1285
          %1308 = vmatprep.subr.bf16.mxu0 0
          %1309 = vmatpush1.bf16.msra.mxu0 %v1286
          %1310 = vmatprep.subr.bf16.mxu0 0
          %1311 = vmatpush1.bf16.msra.mxu0 %v1287
          %1312 = vmatprep.subr.bf16.mxu0 0
          %1313 = vmatpush1.bf16.msra.mxu0 0
          %1314 = vmatprep.subr.bf16.mxu0 0
          %1315 = vmatpush1.bf16.msra.mxu0 0
          %1316 = vmatprep.subr.bf16.mxu0 0
          %1317 = vmatpush1.bf16.msra.mxu0 0
          %1318 = vmatprep.subr.bf16.mxu0 0
          %1319 = vmatpush1.bf16.msra.mxu0 0
          %1320 = vmatprep.subr.bf16.mxu0 0
          %1321 = vmatpush1.bf16.msra.mxu0 0
          %1322 = vmatprep.subr.bf16.mxu0 0
          %1323 = vmatpush1.bf16.msra.mxu0 0
          %1324 = vmatprep.subr.bf16.mxu0 0
          %1325 = vmatpush1.bf16.msra.mxu0 0
          %1326 = vmatprep.subr.bf16.mxu0 0
          %1327 = vmatpush1.bf16.msra.mxu0 0
          %1328 = vmatprep.mubr.bf16.mxu0 0
          %1329 = vmatmul.mubr.bf16.gmra.mrb[0].mxu0 %v1246
          %v1330 = vpop.f32.mrb[0].mxu0
          %v1331 = vadd.f32 0.0, %v1330
          %v1332 = vpop.f32.mrb[0].mxu0
          %v1333 = vpop.f32.mrb[0].mxu0
          %v1334 = vadd.f32 0.0, %v1333
          %v1335 = vpop.f32.mrb[0].mxu0
          %1336 = vdwg.mxu0
          %v1337 = vadd.f32 %v1216, %v1331
          %v1338 = vadd.f32 %v1219, %v1334
          %v1339 = vld [vmem:[%s4] sm:$0x1]
          %v1341 = vlaneseq
          %v1342 = vshrl.u32 %v1341, 7
          %v1343 = vsub.s32 0, %v1342
          %v1344 = vrot.slane %v1339, %v1343
          %v1346 = vadd.f32 %v1337, %v1344
          %v1347 = vadd.f32 %v1338, %v1344
          %v1348 = vxor.u32 %v1346, 2147483648
          %v1349 = vxor.u32 %v1347, 2147483648
          %v1350 = vmul.f32 %v1348, 1.442695
          %v1351 = vpow.pop %v1350
          %v1352 = vmul.f32 %v1349, 1.442695
          %v1353 = vpow.pop %v1352
          %v1354 = vadd.f32 %v1351, 1.0
          %v1355 = vadd.f32 %v1353, 1.0
          %v1356 = vrcp.pop %v1354
          %v1357 = vmul.f32 1.0, %v1356
          %v1358 = vrcp.pop %v1355
          %v1359 = vmul.f32 1.0, %v1358
          %v1360 = vmul.f32 %v1346, %v1357
          %v1361 = vmul.f32 %v1347, %v1359
          %s1362 = scalar_lea.vmem %s1, 8
          %v1363 = vld [vmem:[%s1362] sm:$0xf]
          %v1364 = vld [vmem:[%s1362 + $0x4] sm:$0xf]
          %v1365 = vld [vmem:[#allocation3] sm:$0xff]
          %v1366 = vld [vmem:[#allocation3 + $0x8] sm:$0xff]
          %v1367 = vld [vmem:[#allocation3 + $0x10] sm:$0xff]
          %v1368 = vld [vmem:[#allocation3 + $0x18] sm:$0xff]
          %v1369 = vld [vmem:[#allocation3 + $0x20] sm:$0xff]
          %v1370 = vld [vmem:[#allocation3 + $0x28] sm:$0xff]
          %v1371 = vld [vmem:[#allocation3 + $0x30] sm:$0xff]
          %v1372 = vld [vmem:[#allocation3 + $0x38] sm:$0xff]
          %v1373 = vld [vmem:[#allocation3 + $0x40] sm:$0xff]
          %v1374 = vld [vmem:[#allocation3 + $0x48] sm:$0xff]
          %v1375 = vld [vmem:[#allocation3 + $0x50] sm:$0xff]
          %v1376 = vld [vmem:[#allocation3 + $0x58] sm:$0xff]
          %v1377 = vld [vmem:[#allocation3 + $0x60] sm:$0xff]
          %v1378 = vld [vmem:[#allocation3 + $0x68] sm:$0xff]
          %v1379 = vld [vmem:[#allocation3 + $0x70] sm:$0xff]
          %v1380 = vld [vmem:[#allocation3 + $0x78] sm:$0xff]
          %v1381 = vpack.c.bf16 %v1361, %v1360
          %1382 = vxpose.xlu0.c.b16.start [1/8] %v1381, 128
          %1383 = vxpose.xlu0.c.b16.cont [2/8] 0, 128
          %1384 = vxpose.xlu0.c.b16.cont [3/8] 0, 128
          %1385 = vxpose.xlu0.c.b16.cont [4/8] 0, 128
          %1386 = vxpose.xlu0.c.b16.cont [5/8] 0, 128
          %1387 = vxpose.xlu0.c.b16.cont [6/8] 0, 128
          %1388 = vxpose.xlu0.c.b16.cont [7/8] 0, 128
          %1389 = vxpose.xlu0.c.b16.end [8/8] 0, 128
          %v1390 = vpop.trf.xlu0
          %v1391 = vpop.trf.xlu0
          %v1392 = vpop.trf.xlu0
          %v1393 = vpop.trf.xlu0
          %v1394 = vpop.trf.xlu0
          %v1395 = vpop.trf.xlu0
          %v1396 = vpop.trf.xlu0
          %v1397 = vpop.trf.xlu0
          %v1400 = vunpack.c.l.b16 %v1363
          %v1401 = vunpack.c.l.b16 %v1364
          %v1402 = vpack.c.b16 %v1401, %v1400
          %vm1404 = vcmask 130048
          %v1406 = vsel %vm1404, %v1390, 0
          %v1409 = vsel %vm1404, %v1391, 0
          %v1412 = vsel %vm1404, %v1392, 0
          %v1415 = vsel %vm1404, %v1393, 0
          %v1418 = vsel %vm1404, %v1394, 0
          %v1421 = vsel %vm1404, %v1395, 0
          %v1424 = vsel %vm1404, %v1396, 0
          %v1427 = vsel %vm1404, %v1397, 0
          %1429 = vmatprep.subr.bf16.mxu0 0
          %1430 = vmatpush1.bf16.msra.mxu0 %v1402
          %1431 = vmatprep.subr.bf16.mxu0 0
          %1432 = vmatpush1.bf16.msra.mxu0 0
          %1433 = vmatprep.subr.bf16.mxu0 0
          %1434 = vmatpush1.bf16.msra.mxu0 0
          %1435 = vmatprep.subr.bf16.mxu0 0
          %1436 = vmatpush1.bf16.msra.mxu0 0
          %1437 = vmatprep.subr.bf16.mxu0 0
          %1438 = vmatpush1.bf16.msra.mxu0 0
          %1439 = vmatprep.subr.bf16.mxu0 0
          %1440 = vmatpush1.bf16.msra.mxu0 0
          %1441 = vmatprep.subr.bf16.mxu0 0
          %1442 = vmatpush1.bf16.msra.mxu0 0
          %1443 = vmatprep.subr.bf16.mxu0 0
          %1444 = vmatpush1.bf16.msra.mxu0 0
          %1445 = vmatprep.subr.bf16.mxu0 0
          %1446 = vmatpush1.bf16.msra.mxu0 0
          %1447 = vmatprep.subr.bf16.mxu0 0
          %1448 = vmatpush1.bf16.msra.mxu0 0
          %1449 = vmatprep.subr.bf16.mxu0 0
          %1450 = vmatpush1.bf16.msra.mxu0 0
          %1451 = vmatprep.subr.bf16.mxu0 0
          %1452 = vmatpush1.bf16.msra.mxu0 0
          %1453 = vmatprep.subr.bf16.mxu0 0
          %1454 = vmatpush1.bf16.msra.mxu0 0
          %1455 = vmatprep.subr.bf16.mxu0 0
          %1456 = vmatpush1.bf16.msra.mxu0 0
          %1457 = vmatprep.subr.bf16.mxu0 0
          %1458 = vmatpush1.bf16.msra.mxu0 0
          %1459 = vmatprep.subr.bf16.mxu0 0
          %1460 = vmatpush1.bf16.msra.mxu0 0
          %1461 = vmatprep.mubr.bf16.mxu0 0
          %1462 = vmatmul.mubr.bf16.gmra.mrb[0].mxu0 %v1406
          %v1463 = vpop.f32.mrb[0].mxu0
          %v1464 = vadd.f32 0.0, %v1463
          %v1465 = vpop.f32.mrb[0].mxu0
          %v1466 = vpop.f32.mrb[0].mxu0
          %v1467 = vadd.f32 0.0, %v1466
          %v1468 = vpop.f32.mrb[0].mxu0
          %1469 = vmatprep.mubr.bf16.mxu0 0
          %1470 = vmatmul.mubr.bf16.gmra.mrb[0].mxu0 %v1409
          %v1471 = vpop.f32.mrb[0].mxu0
          %v1472 = vadd.f32 0.0, %v1471
          %v1473 = vpop.f32.mrb[0].mxu0
          %v1474 = vpop.f32.mrb[0].mxu0
          %v1475 = vadd.f32 0.0, %v1474
          %v1476 = vpop.f32.mrb[0].mxu0
          %1477 = vmatprep.mubr.bf16.mxu0 0
          %1478 = vmatmul.mubr.bf16.gmra.mrb[0].mxu0 %v1412
          %v1479 = vpop.f32.mrb[0].mxu0
          %v1480 = vadd.f32 0.0, %v1479
          %v1481 = vpop.f32.mrb[0].mxu0
          %v1482 = vpop.f32.mrb[0].mxu0
          %v1483 = vadd.f32 0.0, %v1482
          %v1484 = vpop.f32.mrb[0].mxu0
          %1485 = vmatprep.mubr.bf16.mxu0 0
          %1486 = vmatmul.mubr.bf16.gmra.mrb[0].mxu0 %v1415
          %v1487 = vpop.f32.mrb[0].mxu0
          %v1488 = vadd.f32 0.0, %v1487
          %v1489 = vpop.f32.mrb[0].mxu0
          %v1490 = vpop.f32.mrb[0].mxu0
          %v1491 = vadd.f32 0.0, %v1490
          %v1492 = vpop.f32.mrb[0].mxu0
          %1493 = vmatprep.mubr.bf16.mxu0 0
          %1494 = vmatmul.mubr.bf16.gmra.mrb[0].mxu0 %v1418
          %v1495 = vpop.f32.mrb[0].mxu0
          %v1496 = vadd.f32 0.0, %v1495
          %v1497 = vpop.f32.mrb[0].mxu0
          %v1498 = vpop.f32.mrb[0].mxu0
          %v1499 = vadd.f32 0.0, %v1498
          %v1500 = vpop.f32.mrb[0].mxu0
          %1501 = vmatprep.mubr.bf16.mxu0 0
          %1502 = vmatmul.mubr.bf16.gmra.mrb[0].mxu0 %v1421
          %v1503 = vpop.f32.mrb[0].mxu0
          %v1504 = vadd.f32 0.0, %v1503
          %v1505 = vpop.f32.mrb[0].mxu0
          %v1506 = vpop.f32.mrb[0].mxu0
          %v1507 = vadd.f32 0.0, %v1506
          %v1508 = vpop.f32.mrb[0].mxu0
          %1509 = vmatprep.mubr.bf16.mxu0 0
          %1510 = vmatmul.mubr.bf16.gmra.mrb[0].mxu0 %v1424
          %v1511 = vpop.f32.mrb[0].mxu0
          %v1512 = vadd.f32 0.0, %v1511
          %v1513 = vpop.f32.mrb[0].mxu0
          %v1514 = vpop.f32.mrb[0].mxu0
          %v1515 = vadd.f32 0.0, %v1514
          %v1516 = vpop.f32.mrb[0].mxu0
          %1517 = vmatprep.mubr.bf16.mxu0 0
          %1518 = vmatmul.mubr.bf16.gmra.mrb[0].mxu0 %v1427
          %v1519 = vpop.f32.mrb[0].mxu0
          %v1520 = vadd.f32 0.0, %v1519
          %v1521 = vpop.f32.mrb[0].mxu0
          %v1522 = vpop.f32.mrb[0].mxu0
          %v1523 = vadd.f32 0.0, %v1522
          %v1524 = vpop.f32.mrb[0].mxu0
          %1525 = vdwg.mxu0
          %v1526 = vadd.f32 %v1365, %v1464
          %v1527 = vadd.f32 %v1366, %v1467
          %v1528 = vadd.f32 %v1367, %v1472
          %v1529 = vadd.f32 %v1368, %v1475
          %v1530 = vadd.f32 %v1369, %v1480
          %v1531 = vadd.f32 %v1370, %v1483
          %v1532 = vadd.f32 %v1371, %v1488
          %v1533 = vadd.f32 %v1372, %v1491
          %v1534 = vadd.f32 %v1373, %v1496
          %v1535 = vadd.f32 %v1374, %v1499
          %v1536 = vadd.f32 %v1375, %v1504
          %v1537 = vadd.f32 %v1376, %v1507
          %v1538 = vadd.f32 %v1377, %v1512
          %v1539 = vadd.f32 %v1378, %v1515
          %v1540 = vadd.f32 %v1379, %v1520
          %v1541 = vadd.f32 %v1380, %v1523
          %1542 = vst [vmem:[#allocation3] sm:$0xff] %v1526
          %1543 = vst [vmem:[#allocation3 + $0x8] sm:$0xff] %v1527
          %1544 = vst [vmem:[#allocation3 + $0x10] sm:$0xff] %v1528
          %1545 = vst [vmem:[#allocation3 + $0x18] sm:$0xff] %v1529
          %1546 = vst [vmem:[#allocation3 + $0x20] sm:$0xff] %v1530
          %1547 = vst [vmem:[#allocation3 + $0x28] sm:$0xff] %v1531
          %1548 = vst [vmem:[#allocation3 + $0x30] sm:$0xff] %v1532
          %1549 = vst [vmem:[#allocation3 + $0x38] sm:$0xff] %v1533
          %1550 = vst [vmem:[#allocation3 + $0x40] sm:$0xff] %v1534
          %1551 = vst [vmem:[#allocation3 + $0x48] sm:$0xff] %v1535
          %1552 = vst [vmem:[#allocation3 + $0x50] sm:$0xff] %v1536
          %1553 = vst [vmem:[#allocation3 + $0x58] sm:$0xff] %v1537
          %1554 = vst [vmem:[#allocation3 + $0x60] sm:$0xff] %v1538
          %1555 = vst [vmem:[#allocation3 + $0x68] sm:$0xff] %v1539
          %1556 = vst [vmem:[#allocation3 + $0x70] sm:$0xff] %v1540
          %1557 = vst [vmem:[#allocation3 + $0x78] sm:$0xff] %v1541
        $region56: #{mamba_block_forward.1} parent=39 // pred_fallthru
          _
        %p1558 = scmp.eq.s32.totalorder %s25, 1
        // Predicated region
        $region57: #{mamba_block_forward.1} parent=39 // pred_check
          %p1559 = pneg %p1558
        $region58: #{mamba_block_forward.1} parent=39 // pred_check_branch
          %1561 = sbr.rel (%p1559) target = $region60
        $region59: #{mamba_block_forward.1} parent=39 // pred_region
          %v1562 = vld [vmem:[#allocation3] sm:$0xff]
          %v1563 = vld [vmem:[#allocation3 + $0x8] sm:$0xff]
          %v1564 = vld [vmem:[#allocation3 + $0x10] sm:$0xff]
          %v1565 = vld [vmem:[#allocation3 + $0x18] sm:$0xff]
          %v1566 = vld [vmem:[#allocation3 + $0x20] sm:$0xff]
          %v1567 = vld [vmem:[#allocation3 + $0x28] sm:$0xff]
          %v1568 = vld [vmem:[#allocation3 + $0x30] sm:$0xff]
          %v1569 = vld [vmem:[#allocation3 + $0x38] sm:$0xff]
          %v1570 = vld [vmem:[#allocation3 + $0x40] sm:$0xff]
          %v1571 = vld [vmem:[#allocation3 + $0x48] sm:$0xff]
          %v1572 = vld [vmem:[#allocation3 + $0x50] sm:$0xff]
          %v1573 = vld [vmem:[#allocation3 + $0x58] sm:$0xff]
          %v1574 = vld [vmem:[#allocation3 + $0x60] sm:$0xff]
          %v1575 = vld [vmem:[#allocation3 + $0x68] sm:$0xff]
          %v1576 = vld [vmem:[#allocation3 + $0x70] sm:$0xff]
          %v1577 = vld [vmem:[#allocation3 + $0x78] sm:$0xff]
          %v1578 = vpack.c.bf16 %v1563, %v1562
          %v1579 = vpack.c.bf16 %v1565, %v1564
          %v1580 = vpack.c.bf16 %v1567, %v1566
          %v1581 = vpack.c.bf16 %v1569, %v1568
          %v1582 = vpack.c.bf16 %v1571, %v1570
          %v1583 = vpack.c.bf16 %v1573, %v1572
          %v1584 = vpack.c.bf16 %v1575, %v1574
          %v1585 = vpack.c.bf16 %v1577, %v1576
          %v1586 = vunpack.c.l.bf16 %v1578
          %v1587 = vunpack.c.h.bf16 %v1578
          %v1588 = vunpack.c.l.bf16 %v1579
          %v1589 = vunpack.c.h.bf16 %v1579
          %v1590 = vunpack.c.l.bf16 %v1580
          %v1591 = vunpack.c.h.bf16 %v1580
          %v1592 = vunpack.c.l.bf16 %v1581
          %v1593 = vunpack.c.h.bf16 %v1581
          %v1594 = vunpack.c.l.bf16 %v1582
          %v1595 = vunpack.c.h.bf16 %v1582
          %v1596 = vunpack.c.l.bf16 %v1583
          %v1597 = vunpack.c.h.bf16 %v1583
          %v1598 = vunpack.c.l.bf16 %v1584
          %v1599 = vunpack.c.h.bf16 %v1584
          %v1600 = vunpack.c.l.bf16 %v1585
          %v1601 = vunpack.c.h.bf16 %v1585
          %v1602 = vsub.f32 %v1562, %v1586
          %v1603 = vsub.f32 %v1563, %v1587
          %v1604 = vsub.f32 %v1564, %v1588
          %v1605 = vsub.f32 %v1565, %v1589
          %v1606 = vsub.f32 %v1566, %v1590
          %v1607 = vsub.f32 %v1567, %v1591
          %v1608 = vsub.f32 %v1568, %v1592
          %v1609 = vsub.f32 %v1569, %v1593
          %v1610 = vsub.f32 %v1570, %v1594
          %v1611 = vsub.f32 %v1571, %v1595
          %v1612 = vsub.f32 %v1572, %v1596
          %v1613 = vsub.f32 %v1573, %v1597
          %v1614 = vsub.f32 %v1574, %v1598
          %v1615 = vsub.f32 %v1575, %v1599
          %v1616 = vsub.f32 %v1576, %v1600
          %v1617 = vsub.f32 %v1577, %v1601
          %v1618 = vpack.c.bf16 %v1603, %v1602
          %v1619 = vpack.c.bf16 %v1605, %v1604
          %v1620 = vpack.c.bf16 %v1607, %v1606
          %v1621 = vpack.c.bf16 %v1609, %v1608
          %v1622 = vpack.c.bf16 %v1611, %v1610
          %v1623 = vpack.c.bf16 %v1613, %v1612
          %v1624 = vpack.c.bf16 %v1615, %v1614
          %v1625 = vpack.c.bf16 %v1617, %v1616
          %s1626 = smul.u32 %s26, 16
          %s1627 = sadd.s32 %s1626, 16
          %s1628 = sshra.s32 %s1627, 4
          %s1629 = sand.u32 %s1627, 15
          %s1630 = smul.addr %s1628, 8
          %s1631 = scalar_lea.vmem [#allocation2], %s1630
          %v1632 = vld [vmem:[%s1631] sm:$0xff]
          %1633 = vmatprep.subr.bf16.mxu0 0
          %1634 = vmatpush1.bf16.msra.mxu0 %v1618
          %1635 = vmatprep.subr.bf16.mxu0 0
          %1636 = vmatpush1.bf16.msra.mxu0 %v1619
          %1637 = vmatprep.subr.bf16.mxu0 0
          %1638 = vmatpush1.bf16.msra.mxu0 %v1620
          %1639 = vmatprep.subr.bf16.mxu0 0
          %1640 = vmatpush1.bf16.msra.mxu0 %v1621
          %1641 = vmatprep.subr.bf16.mxu0 0
          %1642 = vmatpush1.bf16.msra.mxu0 %v1622
          %1643 = vmatprep.subr.bf16.mxu0 0
          %1644 = vmatpush1.bf16.msra.mxu0 %v1623
          %1645 = vmatprep.subr.bf16.mxu0 0
          %1646 = vmatpush1.bf16.msra.mxu0 %v1624
          %1647 = vmatprep.subr.bf16.mxu0 0
          %1648 = vmatpush1.bf16.msra.mxu0 %v1625
          %1649 = vmatprep.subr.bf16.mxu0 0
          %1650 = vmatpush1.bf16.msra.mxu0 0
          %1651 = vmatprep.subr.bf16.mxu0 0
          %1652 = vmatpush1.bf16.msra.mxu0 0
          %1653 = vmatprep.subr.bf16.mxu0 0
          %1654 = vmatpush1.bf16.msra.mxu0 0
          %1655 = vmatprep.subr.bf16.mxu0 0
          %1656 = vmatpush1.bf16.msra.mxu0 0
          %1657 = vmatprep.subr.bf16.mxu0 0
          %1658 = vmatpush1.bf16.msra.mxu0 0
          %1659 = vmatprep.subr.bf16.mxu0 0
          %1660 = vmatpush1.bf16.msra.mxu0 0
          %1661 = vmatprep.subr.bf16.mxu0 0
          %1662 = vmatpush1.bf16.msra.mxu0 0
          %1663 = vmatprep.subr.bf16.mxu0 0
          %1664 = vmatpush1.bf16.msra.mxu0 0
          %1665 = vmatprep.mubr.bf16.mxu0 0
          %1666 = vmatmul.mubr.bf16.gmra.mrb[0].mxu0 %v1632
          %v1667 = vpop.f32.mrb[0].mxu0
          %v1668 = vadd.f32 0.0, %v1667
          %v1669 = vpop.f32.mrb[0].mxu0
          %v1670 = vpop.f32.mrb[0].mxu0
          %v1671 = vadd.f32 0.0, %v1670
          %v1672 = vpop.f32.mrb[0].mxu0
          %1673 = vdwg.mxu0
          %1674 = vmatprep.subr.bf16.mxu0 0
          %1675 = vmatpush1.bf16.msra.mxu0 %v1578
          %1676 = vmatprep.subr.bf16.mxu0 0
          %1677 = vmatpush1.bf16.msra.mxu0 %v1579
          %1678 = vmatprep.subr.bf16.mxu0 0
          %1679 = vmatpush1.bf16.msra.mxu0 %v1580
          %1680 = vmatprep.subr.bf16.mxu0 0
          %1681 = vmatpush1.bf16.msra.mxu0 %v1581
          %1682 = vmatprep.subr.bf16.mxu0 0
          %1683 = vmatpush1.bf16.msra.mxu0 %v1582
          %1684 = vmatprep.subr.bf16.mxu0 0
          %1685 = vmatpush1.bf16.msra.mxu0 %v1583
          %1686 = vmatprep.subr.bf16.mxu0 0
          %1687 = vmatpush1.bf16.msra.mxu0 %v1584
          %1688 = vmatprep.subr.bf16.mxu0 0
          %1689 = vmatpush1.bf16.msra.mxu0 %v1585
          %1690 = vmatprep.subr.bf16.mxu0 0
          %1691 = vmatpush1.bf16.msra.mxu0 0
          %1692 = vmatprep.subr.bf16.mxu0 0
          %1693 = vmatpush1.bf16.msra.mxu0 0
          %1694 = vmatprep.subr.bf16.mxu0 0
          %1695 = vmatpush1.bf16.msra.mxu0 0
          %1696 = vmatprep.subr.bf16.mxu0 0
          %1697 = vmatpush1.bf16.msra.mxu0 0
          %1698 = vmatprep.subr.bf16.mxu0 0
          %1699 = vmatpush1.bf16.msra.mxu0 0
          %1700 = vmatprep.subr.bf16.mxu0 0
          %1701 = vmatpush1.bf16.msra.mxu0 0
          %1702 = vmatprep.subr.bf16.mxu0 0
          %1703 = vmatpush1.bf16.msra.mxu0 0
          %1704 = vmatprep.subr.bf16.mxu0 0
          %1705 = vmatpush1.bf16.msra.mxu0 0
          %1706 = vmatprep.mubr.bf16.mxu0 0
          %1707 = vmatmul.mubr.bf16.gmra.mrb[0].mxu0 %v1632
          %v1708 = vpop.f32.mrb[0].mxu0
          %v1709 = vadd.f32 %v1668, %v1708
          %v1710 = vpop.f32.mrb[0].mxu0
          %v1711 = vpop.f32.mrb[0].mxu0
          %v1712 = vadd.f32 %v1671, %v1711
          %v1713 = vpop.f32.mrb[0].mxu0
          %1714 = vdwg.mxu0
          %v1715 = vld [vmem:[%s2] sm:$0x1]
          %v1717 = vlaneseq
          %v1718 = vshrl.u32 %v1717, 7
          %v1719 = vsub.s32 0, %v1718
          %v1720 = vrot.slane %v1715, %v1719
          %v1722 = vadd.f32 %v1709, %v1720
          %v1723 = vadd.f32 %v1712, %v1720
          %1724 = vst [vmem:[%s266] sm:$0xff] %v1722
          %1725 = vst [vmem:[%s266 + $0x8] sm:$0xff] %v1723
        $region60: #{mamba_block_forward.1} parent=39 // pred_fallthru
          _
        %s1726 = sand.u32 %s168, 1
        %s1727 = scalar_lea.sflag [#allocation5], %s1726
        %s1728 = sand.u32 %s168, 1
        %s1729 = smul.addr %s1728, 16
        %s1730 = scalar_lea.vmem [#allocation4], %s1729
        // Predicated region
        $region61: #{mamba_block_forward.1} parent=39 // pred_check
          %p1731 = pneg %p178
        $region62: #{mamba_block_forward.1} parent=39 // pred_check_branch
          %1733 = sbr.rel (%p1731) target = $region64
        $region63: #{mamba_block_forward.1} parent=39 // pred_region
          %s1734 = smul.u32 %s25, %s26
          %s1735 = smul.u32 2, %s1734
          %s1737 = ssub.s32 256, 256
          %1738 = vsyncadd %s1727, %s1737
          %s1739 = smul.addr %s24, 4
          %s1740 = sadd.s32 %s1735, %s1739
          %s1741 = smul.addr %s1740, 128
          %s1742 = scalar_lea.hbm %s5, %s1741
          %s1743 = sshll.u32 %s1730, 4
          %s1744 = int_to_ptr.vmem [resolvable:$true] %s1743
          %1749 = dma.vmem_to_hbm [thread:$0]  %s1744, 256, %s1742, %s1727, 128, 128, 8
        $region64: #{mamba_block_forward.1} parent=39 // pred_fallthru
          _
      $region40: #{mamba_block_forward.1} parent=5 // pred_fallthru
        _
      %p1750 = scmp.le.s32.totalorder 2, %s14
      // Predicated region
      $region65: #{mamba_block_forward.1} parent=5 // pred_check
        %p1751 = pneg %p1750
      $region66: #{mamba_block_forward.1} parent=5 // pred_check_branch
        %1753 = sbr.rel (%p1751) target = $region68
      $region67: #{mamba_block_forward.1} parent=5 // pred_region
        %s1754 = ssub.s32 %s14, 2
        // Predicated region
        $region69: #{mamba_block_forward.1} parent=67 // pred_check
          %p1755 = pneg %p184
        $region70: #{mamba_block_forward.1} parent=67 // pred_check_branch
          %1757 = sbr.rel (%p1755) target = $region72
        $region71: #{mamba_block_forward.1} parent=67 // pred_region
          %s1758 = sand.u32 %s169, 1
          %s1759 = scalar_lea.sflag [#allocation5], %s1758
          %s1760 = sand.u32 %s169, 1
          %s1761 = smul.addr %s1760, 16
          %s1762 = scalar_lea.vmem [#allocation4], %s1761
          %1763 = dma.done %s1759, 256
        $region72: #{mamba_block_forward.1} parent=67 // pred_fallthru
          _
      $region68: #{mamba_block_forward.1} parent=5 // pred_fallthru
        _
    $region6: #{mamba_block_forward.1} parent=1 // loop_footer
      %s18 = sadd.s32 1, %s14
    $region7: #{mamba_block_forward.1} parent=1 // loop_footer_branch
      %13 = sbr.rel target = $region3
    $region8: #{mamba_block_forward.1} parent=1 // loop_exit
      _
    %1764 = vsyncpa [#allocation5], 1
    %s1765 = scalar_lea.sflag [#allocation5], 1
    %1766 = vsyncpa %s1765, 1

</llo_original>
